<compile_context>
chip_gen: v7x
topology: tpu7x:2x2x1
jax: 0.10.0
libtpu: 0.0.40
codegen_flags: <defaults>
</compile_context>

<pallas_src>
import functools

import jax
import jax.numpy as jnp
from jax import lax
from jax.experimental import pallas as pl
from jax.experimental.pallas import tpu as pltpu


def _round_up(x, m):
    return (x + m - 1) // m * m


# -------------------------- Pallas kernel ---------------------------------

def _fused_self_attention(x_bf16, w_qkv_ref, b_qkv_ref, f_pad, col_mask):
    """torch SelfAttention semantics on a 2-D (B_pad, F_pad) tensor.

    QKV is a single fused matmul; the 1/sqrt(F_real) scale is pre-folded into
    the Q columns of w_qkv / b_qkv by the wrapper.  F is zero-padded to a 128
    multiple so the q/k/v lane slices are tile-aligned free views (the zero
    feature columns add nothing to QK^T or PV).  attn = softmax(q @ k^T)
    is (B, B); output = attn @ v is (B, F_pad).  Padded batch columns are
    masked out so results for the real rows match the unpadded reference.
    """
    # One wide MXU op instead of three small ones.
    qkv = jnp.dot(x_bf16, w_qkv_ref[...],
                  preferred_element_type=jnp.float32) + b_qkv_ref[...]
    q = qkv[:, :f_pad]
    k = qkv[:, f_pad:2 * f_pad]
    v = qkv[:, 2 * f_pad:]

    # Contract the feature axis directly (no k.T materialization).
    s = lax.dot_general(
        q.astype(jnp.bfloat16), k.astype(jnp.bfloat16),
        (((1,), (1,)), ((), ())),
        preferred_element_type=jnp.float32,
    )                                                            # (B_pad, B_pad)
    if col_mask is not None:
        s = jnp.where(col_mask, s, -1e30)

    # numerically-stable softmax; divide -> EUP reciprocal
    s = s - jnp.max(s, axis=-1, keepdims=True)
    p = jnp.exp(s)
    p = p * pl.reciprocal(jnp.sum(p, axis=-1, keepdims=True), approx=True)

    return jnp.dot(p.astype(jnp.bfloat16), v.astype(jnp.bfloat16),
                   preferred_element_type=jnp.float32)           # (B_pad, F_pad)


def idihr_kernel(
    pool_w_ref, m_ref,
    wqkv2_ref, bqkv2_ref,
    wqkv3_ref, bqkv3_ref,
    wfc_h_ref, wfc_l_ref, bfc_ref,
    out_ref,
    *, h_pad, l_pad, b_real,
):
    """One grid step = one independent attention block + its partial FC.

    grid=(2,), dimension_semantics=("parallel",): on v7x the two blocks run on
    separate TensorCores; on v5e/v6e this is a 2-step serial loop.  The final
    logits are the sum of the two partial outputs (done in the wrapper); the
    fc bias is added exactly once, on block 0.
    """
    b_pad = pool_w_ref.shape[0]
    if b_real < b_pad:
        # mask padded batch columns out of the (B, B) attention scores
        col_mask = lax.broadcasted_iota(jnp.int32, (b_pad, b_pad), 1) < b_real
    else:
        col_mask = None

    blk = pl.program_id(0)

    @pl.when(blk == 0)
    def _():
        # a2 : SelfAttention over hidden_size features + partial fc
        x2 = _fused_self_attention(pool_w_ref[...], wqkv2_ref, bqkv2_ref,
                                   h_pad, col_mask)              # (B_pad, H_pad)
        out = jnp.dot(x2.astype(jnp.bfloat16), wfc_h_ref[...],
                      preferred_element_type=jnp.float32) + bfc_ref[...]
        out_ref[...] = out.astype(out_ref.dtype)                 # lane-dense store

    @pl.when(blk == 1)
    def _():
        # a3 : SelfAttention over max_len features + partial fc
        x3 = _fused_self_attention(m_ref[...], wqkv3_ref, bqkv3_ref,
                                   l_pad, col_mask)              # (B_pad, L_pad)
        out = jnp.dot(x3.astype(jnp.bfloat16), wfc_l_ref[...],
                      preferred_element_type=jnp.float32)
        out_ref[...] = out.astype(out_ref.dtype)


# ----------------------- wrapper-side parameter prep -----------------------

def prepare_head_params(params, hidden, max_len, num_labels):
    """Fuse / pre-scale / zero-pad / cast the head weights.

    Call ONCE at model init (not per forward): the result is reused by every
    idihr_head call, so no per-call weight re-fusion / HBM re-write happens.
    """
    h_pad = _round_up(hidden, 128)
    l_pad = _round_up(max_len, 128)
    n_pad = _round_up(max(num_labels, 1), 128)

    def fuse_qkv(prefix, f, f_pad):
        scale = 1.0 / (float(f) ** 0.5)      # torch scales by the REAL in_features
        pad_w = lambda w: jnp.pad(w, ((0, f_pad - f), (0, f_pad - f)))
        pad_b = lambda b: jnp.pad(b, ((0, 0), (0, f_pad - f)))
        w = jnp.concatenate([pad_w(params[prefix + "_wq"] * scale),   # fold 1/sqrt(F)
                             pad_w(params[prefix + "_wk"]),
                             pad_w(params[prefix + "_wv"])], axis=1)
        b = jnp.concatenate([pad_b(params[prefix + "_bq"] * scale),
                             pad_b(params[prefix + "_bk"]),
                             pad_b(params[prefix + "_bv"])], axis=1)
        return w.astype(jnp.bfloat16), b.astype(jnp.float32)

    wqkv2, bqkv2 = fuse_qkv("a2", hidden, h_pad)
    wqkv3, bqkv3 = fuse_qkv("a3", max_len, l_pad)

    # fc kept as two separate chunks (H-part, L-part): each attention block
    # accumulates its own partial fc dot -> no lane-axis concat in the kernel.
    w_fc_h = jnp.pad(params["fc_wh"],
                     ((0, h_pad - hidden), (0, n_pad - num_labels))).astype(jnp.bfloat16)
    w_fc_l = jnp.pad(params["fc_wl"],
                     ((0, l_pad - max_len), (0, n_pad - num_labels))).astype(jnp.bfloat16)
    b_fc = jnp.pad(params["fc_b"],
                   ((0, 0), (0, n_pad - num_labels))).astype(jnp.float32)

    return {
        "wqkv2": wqkv2, "bqkv2": bqkv2,
        "wqkv3": wqkv3, "bqkv3": bqkv3,
        "w_fc_h": w_fc_h, "w_fc_l": w_fc_l, "b_fc": b_fc,
        "h_pad": h_pad, "l_pad": l_pad, "n_pad": n_pad,
    }


def idihr_head(pool_w, m, head_params, num_labels):
    """Runs the post-encoder head (a2, a3, fc) in one Pallas kernel."""
    b, hidden = pool_w.shape
    max_len = m.shape[1]
    h_pad = head_params["h_pad"]
    l_pad = head_params["l_pad"]
    n_pad = head_params["n_pad"]
    b_pad = _round_up(b, 16)         # bf16 packs 2 rows/sublane -> (16,128) min tile

    pool_w_p = jnp.pad(pool_w, ((0, b_pad - b), (0, h_pad - hidden))).astype(jnp.bfloat16)
    m_p = jnp.pad(m, ((0, b_pad - b), (0, l_pad - max_len))).astype(jnp.bfloat16)

    inputs = (
        pool_w_p, m_p,
        head_params["wqkv2"], head_params["bqkv2"],
        head_params["wqkv3"], head_params["bqkv3"],
        head_params["w_fc_h"], head_params["w_fc_l"], head_params["b_fc"],
    )

    in_bytes = sum(int(a.size) * a.dtype.itemsize for a in inputs)
    out_bytes = 2 * b_pad * n_pad * 4

    # advisory cost estimate for the XLA scheduler
    flops = (2 * b_pad * h_pad * 3 * h_pad + 4 * b_pad * b_pad * h_pad
             + 2 * b_pad * h_pad * n_pad
             + 2 * b_pad * l_pad * 3 * l_pad + 4 * b_pad * b_pad * l_pad
             + 2 * b_pad * l_pad * n_pad)
    transcendentals = 2 * b_pad * b_pad + 2 * b_pad

    # Right-sized VMEM request: operands + output with ~1.5x headroom, floored
    # at 8 MiB and never the full per-TC capacity (64 MiB on v7x).
    vmem_limit = int(max(8 << 20,
                         min((3 * (in_bytes + out_bytes)) // 2 + (2 << 20), 32 << 20)))

    vmem_spec = pl.BlockSpec(memory_space=pltpu.MemorySpace.VMEM)
    kernel = functools.partial(idihr_kernel,
                               h_pad=h_pad, l_pad=l_pad, b_real=b)

    # TODO(synk): at BERT-scale shapes on v5e the head is weight-DMA bound; hide
    # the wqkv2/w_fc HBM->VMEM transfer behind the encoder with a cross-call
    # prefetch (DMA-semaphore + VMEM-ref outputs consumed by this call).
    partials = pl.pallas_call(
        kernel,
        grid=(2,),           # block 0 = a2 + partial fc, block 1 = a3 + partial fc
        out_shape=jax.ShapeDtypeStruct((2, b_pad, n_pad), jnp.float32),
        in_specs=[vmem_spec] * len(inputs),
        out_specs=pl.BlockSpec((None, b_pad, n_pad), lambda i: (i, 0, 0)),
        compiler_params=pltpu.CompilerParams(
            dimension_semantics=("parallel",),   # v7x: a2 / a3 on separate TCs
            vmem_limit_bytes=vmem_limit,
        ),
        cost_estimate=pl.CostEstimate(
            flops=flops,
            transcendentals=transcendentals,
            bytes_accessed=in_bytes + out_bytes,
        ),
    )(*inputs)

    out = partials[0] + partials[1]      # combine the two per-block partial FCs
    return out[:b, :num_labels]


# ----------------------- parameter / stub setup ----------------------------

def make_params(key, hidden, max_len, num_labels, vocab):
    ks = jax.random.split(key, 16)
    init = lambda k, shape: (0.02 * jax.random.normal(k, shape)).astype(jnp.float32)

    # torch nn.Linear weights are (out, in); stored pre-transposed as (in, out).
    return {
        # SelfAttention a2 (feature_dim = hidden)
        "a2_wq": init(ks[0], (hidden, hidden)),
        "a2_bq": init(ks[1], (1, hidden)),
        "a2_wk": init(ks[2], (hidden, hidden)),
        "a2_bk": init(ks[3], (1, hidden)),
        "a2_wv": init(ks[4], (hidden, hidden)),
        "a2_bv": init(ks[5], (1, hidden)),
        # SelfAttention a3 (feature_dim = max_len)
        "a3_wq": init(ks[6], (max_len, max_len)),
        "a3_bq": init(ks[7], (1, max_len)),
        "a3_wk": init(ks[8], (max_len, max_len)),
        "a3_bk": init(ks[9], (1, max_len)),
        "a3_wv": init(ks[10], (max_len, max_len)),
        "a3_bv": init(ks[11], (1, max_len)),
        # fc : Linear(hidden + max_len -> num_labels), split by input chunk
        "fc_wh": init(ks[12], (hidden, num_labels)),
        "fc_wl": init(ks[13], (max_len, num_labels)),
        "fc_b": init(ks[14], (1, num_labels)),
        # wobert stub embedding table
        "emb": init(ks[15], (vocab, hidden)),
    }


def wobert_stub(params, input_ids, token_type_ids, attention_mask):
    # TODO(synk): the pretrained 'junnyu/wobert_chinese_plus_base' transformer
    # encoder has no clean in-script Pallas equivalent; replaced by a
    # deterministic embedding-lookup stub producing last_hidden_state.
    emb = params["emb"][input_ids]                         # (B, S, H)
    tt = params["emb"][token_type_ids]                     # (B, S, H)
    last_hidden = (emb + 0.1 * tt) * attention_mask[..., None].astype(jnp.float32)
    return last_hidden


def idihr_ra_forward(params, head_params, x, num_labels):
    """head_params must be built once via prepare_head_params (not per call)."""
    w = x["wobert"]
    m = x["mask"].astype(jnp.float32)

    last_hidden = wobert_stub(
        params, w["input_ids"], w["token_type_ids"], w["attention_mask"]
    )
    pool_w = last_hidden[:, 0]            # CLS token, (B, H)
    # nn.Dropout(0.1) -> identity at inference time.

    return idihr_head(pool_w, m, head_params, num_labels)   # Pallas kernel


# --------------------------------- main ------------------------------------

if __name__ == "__main__":
    B, S, HIDDEN, MAX_LEN, NUM_LABELS, VOCAB = 2, 8, 32, 8, 4, 100

    key = jax.random.PRNGKey(0)
    kp, k1, k2, k3 = jax.random.split(key, 4)

    params = make_params(kp, HIDDEN, MAX_LEN, NUM_LABELS, VOCAB)
    # Built ONCE at init; reused for every forward call.
    head_params = prepare_head_params(params, HIDDEN, MAX_LEN, NUM_LABELS)

    x = {
        "wobert": {
            "input_ids": jax.random.randint(k1, (B, S), 0, VOCAB, dtype=jnp.int32),
            "token_type_ids": jnp.zeros((B, S), dtype=jnp.int32),
            "attention_mask": jnp.ones((B, S), dtype=jnp.int32),
        },
        "mask": jax.random.randint(k2, (B, MAX_LEN), 0, 2, dtype=jnp.int32),
    }

    out = idihr_ra_forward(params, head_params, x, NUM_LABELS)
    out = jax.block_until_ready(out)

    assert out.shape == (B, NUM_LABELS), out.shape
    assert jnp.all(jnp.isfinite(out))
    print("KERNEL_OK")
</pallas_src>

<mosaic_0001>
module attributes {stable_mosaic.version = 11 : i64} {
  func.func @idihr_kernel(%arg0: i32, %arg1: memref<16x128xbf16, #tpu.memory_space<vmem>>, %arg2: memref<16x128xbf16, #tpu.memory_space<vmem>>, %arg3: memref<128x384xbf16, #tpu.memory_space<vmem>>, %arg4: memref<1x384xf32, #tpu.memory_space<vmem>>, %arg5: memref<128x384xbf16, #tpu.memory_space<vmem>>, %arg6: memref<1x384xf32, #tpu.memory_space<vmem>>, %arg7: memref<128x128xbf16, #tpu.memory_space<vmem>>, %arg8: memref<128x128xbf16, #tpu.memory_space<vmem>>, %arg9: memref<1x128xf32, #tpu.memory_space<vmem>>, %arg10: memref<1x16x128xf32, #tpu.memory_space<vmem>>) attributes {dimension_semantics = [#tpu.dimension_semantics<parallel>], iteration_bounds = array<i64: 2>, scalar_prefetch = 0 : i64, scratch_operands = 0 : i64, tpu.core_type = #tpu.core_type<tc>, window_params = [{pipeline_mode = #tpu.pipeline_mode<synchronous>, transform_indices = @transform_0, window_bounds = array<i64: 16, 128>}, {pipeline_mode = #tpu.pipeline_mode<synchronous>, transform_indices = @transform_1, window_bounds = array<i64: 16, 128>}, {pipeline_mode = #tpu.pipeline_mode<synchronous>, transform_indices = @transform_2, window_bounds = array<i64: 128, 384>}, {pipeline_mode = #tpu.pipeline_mode<synchronous>, transform_indices = @transform_3, window_bounds = array<i64: 1, 384>}, {pipeline_mode = #tpu.pipeline_mode<synchronous>, transform_indices = @transform_4, window_bounds = array<i64: 128, 384>}, {pipeline_mode = #tpu.pipeline_mode<synchronous>, transform_indices = @transform_5, window_bounds = array<i64: 1, 384>}, {pipeline_mode = #tpu.pipeline_mode<synchronous>, transform_indices = @transform_6, window_bounds = array<i64: 128, 128>}, {pipeline_mode = #tpu.pipeline_mode<synchronous>, transform_indices = @transform_7, window_bounds = array<i64: 128, 128>}, {pipeline_mode = #tpu.pipeline_mode<synchronous>, transform_indices = @transform_8, window_bounds = array<i64: 1, 128>}, {transform_indices = @transform_9, window_bounds = array<i64: 1, 16, 128>}]} {
    %0 = tpu.iota {dimensions = array<i32: 1>} : vector<16x16xi32>
    %c2_i32 = arith.constant 2 : i32
    %1 = vector.broadcast %c2_i32 : i32 to vector<16x16xi32>
    %2 = arith.cmpi slt, %0, %1 : vector<16x16xi32>
    %c0_i32 = arith.constant 0 : i32
    %3 = arith.cmpi eq, %arg0, %c0_i32 : i32
    %4 = arith.extui %3 : i1 to i32
    %c0_i32_0 = arith.constant 0 : i32
    %5 = arith.cmpi ne, %4, %c0_i32_0 : i32
    scf.if %5 {
      %c0 = arith.constant 0 : index
      %c0_2 = arith.constant 0 : index
      %9 = vector.load %arg1[%c0, %c0_2] : memref<16x128xbf16, #tpu.memory_space<vmem>>, vector<16x128xbf16>
      %c0_3 = arith.constant 0 : index
      %c0_4 = arith.constant 0 : index
      %10 = vector.load %arg3[%c0_3, %c0_4] : memref<128x384xbf16, #tpu.memory_space<vmem>>, vector<128x384xbf16>
      %cst = arith.constant dense<0.000000e+00> : vector<16x384xf32>
      %11 = tpu.matmul %9, %10, %cst {dimension_numbers = #tpu.dot_dimension_numbers<[1], [0], [0], [1], [0, 0, 1, 1], [], []>} : vector<16x128xbf16>, vector<128x384xbf16>, vector<16x384xf32> -> vector<16x384xf32>
      %c0_5 = arith.constant 0 : index
      %c0_6 = arith.constant 0 : index
      %12 = vector.load %arg4[%c0_5, %c0_6] : memref<1x384xf32, #tpu.memory_space<vmem>>, vector<1x384xf32>
      %13 = vector.broadcast %12 : vector<1x384xf32> to vector<16x384xf32>
      %14 = arith.addf %11, %13 : vector<16x384xf32>
      %15 = vector.extract_strided_slice %14 {offsets = [0, 0], sizes = [16, 128], strides = [1, 1]} : vector<16x384xf32> to vector<16x128xf32>
      %16 = vector.extract_strided_slice %14 {offsets = [0, 128], sizes = [16, 128], strides = [1, 1]} : vector<16x384xf32> to vector<16x128xf32>
      %17 = vector.extract_strided_slice %14 {offsets = [0, 256], sizes = [16, 128], strides = [1, 1]} : vector<16x384xf32> to vector<16x128xf32>
      %18 = arith.truncf %15 : vector<16x128xf32> to vector<16x128xbf16>
      %19 = arith.truncf %16 : vector<16x128xf32> to vector<16x128xbf16>
      %cst_7 = arith.constant dense<0.000000e+00> : vector<16x16xf32>
      %20 = tpu.matmul %18, %19, %cst_7 {dimension_numbers = #tpu.dot_dimension_numbers<[1], [1], [0], [0], [0, 0, 1, 0], [], []>} : vector<16x128xbf16>, vector<16x128xbf16>, vector<16x16xf32> -> vector<16x16xf32>
      %cst_8 = arith.constant -1.000000e+30 : f32
      %21 = vector.broadcast %cst_8 : f32 to vector<16x16xf32>
      %22 = arith.select %2, %20, %21 : vector<16x16xi1>, vector<16x16xf32>
      %cst_9 = arith.constant dense<0xFF800000> : vector<16xf32>
      %23 = vector.multi_reduction <maximumf>, %22, %cst_9 [1] : vector<16x16xf32> to vector<16xf32>
      %24 = vector.shape_cast %23 : vector<16xf32> to vector<16x1xf32>
      %25 = vector.broadcast %24 : vector<16x1xf32> to vector<16x16xf32>
      %26 = arith.subf %22, %25 : vector<16x16xf32>
      %27 = math.exp %26 : vector<16x16xf32>
      %cst_10 = arith.constant dense<0.000000e+00> : vector<16xf32>
      %28 = vector.multi_reduction <add>, %27, %cst_10 [1] : vector<16x16xf32> to vector<16xf32>
      %29 = vector.shape_cast %28 : vector<16xf32> to vector<16x1xf32>
      %30 = tpu.reciprocal %29 {approx = true} : vector<16x1xf32> -> vector<16x1xf32>
      %31 = vector.broadcast %30 : vector<16x1xf32> to vector<16x16xf32>
      %32 = arith.mulf %27, %31 : vector<16x16xf32>
      %33 = arith.truncf %32 : vector<16x16xf32> to vector<16x16xbf16>
      %34 = arith.truncf %17 : vector<16x128xf32> to vector<16x128xbf16>
      %cst_11 = arith.constant dense<0.000000e+00> : vector<16x128xf32>
      %35 = tpu.matmul %33, %34, %cst_11 {dimension_numbers = #tpu.dot_dimension_numbers<[1], [0], [0], [1], [0, 0, 1, 1], [], []>} : vector<16x16xbf16>, vector<16x128xbf16>, vector<16x128xf32> -> vector<16x128xf32>
      %36 = arith.truncf %35 : vector<16x128xf32> to vector<16x128xbf16>
      %c0_12 = arith.constant 0 : index
      %c0_13 = arith.constant 0 : index
      %37 = vector.load %arg7[%c0_12, %c0_13] : memref<128x128xbf16, #tpu.memory_space<vmem>>, vector<128x128xbf16>
      %cst_14 = arith.constant dense<0.000000e+00> : vector<16x128xf32>
      %38 = tpu.matmul %36, %37, %cst_14 {dimension_numbers = #tpu.dot_dimension_numbers<[1], [0], [0], [1], [0, 0, 1, 1], [], []>} : vector<16x128xbf16>, vector<128x128xbf16>, vector<16x128xf32> -> vector<16x128xf32>
      %c0_15 = arith.constant 0 : index
      %c0_16 = arith.constant 0 : index
      %39 = vector.load %arg9[%c0_15, %c0_16] : memref<1x128xf32, #tpu.memory_space<vmem>>, vector<1x128xf32>
      %40 = vector.broadcast %39 : vector<1x128xf32> to vector<16x128xf32>
      %41 = arith.addf %38, %40 : vector<16x128xf32>
      %c0_17 = arith.constant 0 : index
      %c0_18 = arith.constant 0 : index
      %c0_19 = arith.constant 0 : index
      %42 = vector.load %arg10[%c0_17, %c0_18, %c0_19] : memref<1x16x128xf32, #tpu.memory_space<vmem>>, vector<1x16x128xf32>
      %43 = vector.shape_cast %42 : vector<1x16x128xf32> to vector<16x128xf32>
      %44 = vector.shape_cast %41 : vector<16x128xf32> to vector<1x16x128xf32>
      tpu.vector_store %arg10[%c0_17, %c0_18, %c0_19], %44 {strides = array<i32>} : memref<1x16x128xf32, #tpu.memory_space<vmem>>, vector<1x16x128xf32>,
    } else {
    }
    %c1_i32 = arith.constant 1 : i32
    %6 = arith.cmpi eq, %arg0, %c1_i32 : i32
    %7 = arith.extui %6 : i1 to i32
    %c0_i32_1 = arith.constant 0 : i32
    %8 = arith.cmpi ne, %7, %c0_i32_1 : i32
    scf.if %8 {
      %c0 = arith.constant 0 : index
      %c0_2 = arith.constant 0 : index
      %9 = vector.load %arg2[%c0, %c0_2] : memref<16x128xbf16, #tpu.memory_space<vmem>>, vector<16x128xbf16>
      %c0_3 = arith.constant 0 : index
      %c0_4 = arith.constant 0 : index
      %10 = vector.load %arg5[%c0_3, %c0_4] : memref<128x384xbf16, #tpu.memory_space<vmem>>, vector<128x384xbf16>
      %cst = arith.constant dense<0.000000e+00> : vector<16x384xf32>
      %11 = tpu.matmul %9, %10, %cst {dimension_numbers = #tpu.dot_dimension_numbers<[1], [0], [0], [1], [0, 0, 1, 1], [], []>} : vector<16x128xbf16>, vector<128x384xbf16>, vector<16x384xf32> -> vector<16x384xf32>
      %c0_5 = arith.constant 0 : index
      %c0_6 = arith.constant 0 : index
      %12 = vector.load %arg6[%c0_5, %c0_6] : memref<1x384xf32, #tpu.memory_space<vmem>>, vector<1x384xf32>
      %13 = vector.broadcast %12 : vector<1x384xf32> to vector<16x384xf32>
      %14 = arith.addf %11, %13 : vector<16x384xf32>
      %15 = vector.extract_strided_slice %14 {offsets = [0, 0], sizes = [16, 128], strides = [1, 1]} : vector<16x384xf32> to vector<16x128xf32>
      %16 = vector.extract_strided_slice %14 {offsets = [0, 128], sizes = [16, 128], strides = [1, 1]} : vector<16x384xf32> to vector<16x128xf32>
      %17 = vector.extract_strided_slice %14 {offsets = [0, 256], sizes = [16, 128], strides = [1, 1]} : vector<16x384xf32> to vector<16x128xf32>
      %18 = arith.truncf %15 : vector<16x128xf32> to vector<16x128xbf16>
      %19 = arith.truncf %16 : vector<16x128xf32> to vector<16x128xbf16>
      %cst_7 = arith.constant dense<0.000000e+00> : vector<16x16xf32>
      %20 = tpu.matmul %18, %19, %cst_7 {dimension_numbers = #tpu.dot_dimension_numbers<[1], [1], [0], [0], [0, 0, 1, 0], [], []>} : vector<16x128xbf16>, vector<16x128xbf16>, vector<16x16xf32> -> vector<16x16xf32>
      %cst_8 = arith.constant -1.000000e+30 : f32
      %21 = vector.broadcast %cst_8 : f32 to vector<16x16xf32>
      %22 = arith.select %2, %20, %21 : vector<16x16xi1>, vector<16x16xf32>
      %cst_9 = arith.constant dense<0xFF800000> : vector<16xf32>
      %23 = vector.multi_reduction <maximumf>, %22, %cst_9 [1] : vector<16x16xf32> to vector<16xf32>
      %24 = vector.shape_cast %23 : vector<16xf32> to vector<16x1xf32>
      %25 = vector.broadcast %24 : vector<16x1xf32> to vector<16x16xf32>
      %26 = arith.subf %22, %25 : vector<16x16xf32>
      %27 = math.exp %26 : vector<16x16xf32>
      %cst_10 = arith.constant dense<0.000000e+00> : vector<16xf32>
      %28 = vector.multi_reduction <add>, %27, %cst_10 [1] : vector<16x16xf32> to vector<16xf32>
      %29 = vector.shape_cast %28 : vector<16xf32> to vector<16x1xf32>
      %30 = tpu.reciprocal %29 {approx = true} : vector<16x1xf32> -> vector<16x1xf32>
      %31 = vector.broadcast %30 : vector<16x1xf32> to vector<16x16xf32>
      %32 = arith.mulf %27, %31 : vector<16x16xf32>
      %33 = arith.truncf %32 : vector<16x16xf32> to vector<16x16xbf16>
      %34 = arith.truncf %17 : vector<16x128xf32> to vector<16x128xbf16>
      %cst_11 = arith.constant dense<0.000000e+00> : vector<16x128xf32>
      %35 = tpu.matmul %33, %34, %cst_11 {dimension_numbers = #tpu.dot_dimension_numbers<[1], [0], [0], [1], [0, 0, 1, 1], [], []>} : vector<16x16xbf16>, vector<16x128xbf16>, vector<16x128xf32> -> vector<16x128xf32>
      %36 = arith.truncf %35 : vector<16x128xf32> to vector<16x128xbf16>
      %c0_12 = arith.constant 0 : index
      %c0_13 = arith.constant 0 : index
      %37 = vector.load %arg8[%c0_12, %c0_13] : memref<128x128xbf16, #tpu.memory_space<vmem>>, vector<128x128xbf16>
      %cst_14 = arith.constant dense<0.000000e+00> : vector<16x128xf32>
      %38 = tpu.matmul %36, %37, %cst_14 {dimension_numbers = #tpu.dot_dimension_numbers<[1], [0], [0], [1], [0, 0, 1, 1], [], []>} : vector<16x128xbf16>, vector<128x128xbf16>, vector<16x128xf32> -> vector<16x128xf32>
      %c0_15 = arith.constant 0 : index
      %c0_16 = arith.constant 0 : index
      %c0_17 = arith.constant 0 : index
      %39 = vector.load %arg10[%c0_15, %c0_16, %c0_17] : memref<1x16x128xf32, #tpu.memory_space<vmem>>, vector<1x16x128xf32>
      %40 = vector.shape_cast %39 : vector<1x16x128xf32> to vector<16x128xf32>
      %41 = vector.shape_cast %38 : vector<16x128xf32> to vector<1x16x128xf32>
      tpu.vector_store %arg10[%c0_15, %c0_16, %c0_17], %41 {strides = array<i32>} : memref<1x16x128xf32, #tpu.memory_space<vmem>>, vector<1x16x128xf32>,
    } else {
    }
    return
  }
  func.func @transform_0(%arg0: i32) -> (i32, i32) {
    %c0_i32 = arith.constant 0 : i32
    %c0_i32_0 = arith.constant 0 : i32
    %c0_i32_1 = arith.constant 0 : i32
    return %c0_i32, %c0_i32_0 : i32, i32
  }
  func.func @transform_1(%arg0: i32) -> (i32, i32) {
    %c0_i32 = arith.constant 0 : i32
    %c0_i32_0 = arith.constant 0 : i32
    %c0_i32_1 = arith.constant 0 : i32
    return %c0_i32, %c0_i32_0 : i32, i32
  }
  func.func @transform_2(%arg0: i32) -> (i32, i32) {
    %c0_i32 = arith.constant 0 : i32
    %c0_i32_0 = arith.constant 0 : i32
    %c0_i32_1 = arith.constant 0 : i32
    return %c0_i32, %c0_i32_0 : i32, i32
  }
  func.func @transform_3(%arg0: i32) -> (i32, i32) {
    %c0_i32 = arith.constant 0 : i32
    %c0_i32_0 = arith.constant 0 : i32
    %c0_i32_1 = arith.constant 0 : i32
    return %c0_i32, %c0_i32_0 : i32, i32
  }
  func.func @transform_4(%arg0: i32) -> (i32, i32) {
    %c0_i32 = arith.constant 0 : i32
    %c0_i32_0 = arith.constant 0 : i32
    %c0_i32_1 = arith.constant 0 : i32
    return %c0_i32, %c0_i32_0 : i32, i32
  }
  func.func @transform_5(%arg0: i32) -> (i32, i32) {
    %c0_i32 = arith.constant 0 : i32
    %c0_i32_0 = arith.constant 0 : i32
    %c0_i32_1 = arith.constant 0 : i32
    return %c0_i32, %c0_i32_0 : i32, i32
  }
  func.func @transform_6(%arg0: i32) -> (i32, i32) {
    %c0_i32 = arith.constant 0 : i32
    %c0_i32_0 = arith.constant 0 : i32
    %c0_i32_1 = arith.constant 0 : i32
    return %c0_i32, %c0_i32_0 : i32, i32
  }
  func.func @transform_7(%arg0: i32) -> (i32, i32) {
    %c0_i32 = arith.constant 0 : i32
    %c0_i32_0 = arith.constant 0 : i32
    %c0_i32_1 = arith.constant 0 : i32
    return %c0_i32, %c0_i32_0 : i32, i32
  }
  func.func @transform_8(%arg0: i32) -> (i32, i32) {
    %c0_i32 = arith.constant 0 : i32
    %c0_i32_0 = arith.constant 0 : i32
    %c0_i32_1 = arith.constant 0 : i32
    return %c0_i32, %c0_i32_0 : i32, i32
  }
  func.func @transform_9(%arg0: i32) -> (i32, i32, i32) {
    %c0_i32 = arith.constant 0 : i32
    %c0_i32_0 = arith.constant 0 : i32
    %c0_i32_1 = arith.constant 0 : i32
    return %arg0, %c0_i32, %c0_i32_0 : i32, i32, i32
  }
}

</mosaic_0001>

<llo_original>
// kernel: tpu_custom_call.1
$region0: #{tpu_custom_call.1}
  #allocation0 [shape = 'u32[]', space=smem, size = 0x4, offset = 0x4, fixed_abs, tag = 'smem constant byte address 0x4 - core index']
  #allocation1 [shape = 'u32[144,128]{1,0:T(1,128)}', space=vmem, size = 0x12000, scoped, tag = 'internal scratch']
  %s0 = inlined_call_operand.hbm [shape: bf16[16,128], index: 0, kind: input, shape index: {}]
  %s1 = inlined_call_operand.hbm [shape: bf16[16,128], index: 1, kind: input, shape index: {}]
  %s2 = inlined_call_operand.hbm [shape: bf16[128,384], index: 2, kind: input, shape index: {}]
  %s3 = inlined_call_operand.vmem [shape: f32[1,384], index: 3, kind: input, shape index: {}]
  %s4 = inlined_call_operand.hbm [shape: bf16[128,384], index: 4, kind: input, shape index: {}]
  %s5 = inlined_call_operand.vmem [shape: f32[1,384], index: 5, kind: input, shape index: {}]
  %s6 = inlined_call_operand.hbm [shape: bf16[128,128], index: 6, kind: input, shape index: {}]
  %s7 = inlined_call_operand.hbm [shape: bf16[128,128], index: 7, kind: input, shape index: {}]
  %s8 = inlined_call_operand.vmem [shape: f32[1,128], index: 8, kind: input, shape index: {}]
  %s9 = inlined_call_operand.hbm [shape: f32[2,16,128], index: 9, kind: output, shape index: {}]
  %s10 = sld [smem:[#allocation0]]
  $region101: #{tpu_custom_call.1} parent=0
    _
  %s12 = ssub.s32 1, %s10
  %s13 = scalar_select 0, %s12, %s10
  $region1: #{tpu_custom_call.1} parent=0
    #allocation2 [shape = 'u8[4096]{0}', space=vmem, size = 0x1000, scoped, tag = 'input window, operand 0, single buffered']
    #allocation3 [shape = 's32[2]{0}', space=sflag, size = 0x8, scoped, tag = 'scoped memory for tpu_custom_call.1']
    #allocation4 [shape = 's32[2]{0}', space=sflag, size = 0x8, scoped, tag = 'scoped memory for tpu_custom_call.1']
    #allocation5 [shape = 'u8[4096]{0}', space=vmem, size = 0x1000, scoped, tag = 'input window, operand 1, single buffered']
    #allocation6 [shape = 's32[1]{0}', space=sflag, size = 0x4, scoped, tag = 'scoped memory for tpu_custom_call.1']
    #allocation7 [shape = 'u8[98304]{0}', space=vmem, size = 0x18000, scoped, tag = 'input window, operand 2, single buffered']
    #allocation8 [shape = 'u8[98304]{0}', space=vmem, size = 0x18000, scoped, tag = 'input window, operand 4, single buffered']
    #allocation9 [shape = 's32[1]{0}', space=sflag, size = 0x4, scoped, tag = 'scoped memory for tpu_custom_call.1']
    #allocation10 [shape = 'u8[32768]{0}', space=vmem, size = 0x8000, scoped, tag = 'input window, operand 6, single buffered']
    #allocation11 [shape = 'u8[32768]{0}', space=vmem, size = 0x8000, scoped, tag = 'input window, operand 7, single buffered']
    #allocation12 [shape = 's32[1]{0}', space=sflag, size = 0x4, scoped, tag = 'scoped memory for tpu_custom_call.1']
    #allocation13 [shape = 'u8[16384]{0}', space=vmem, size = 0x4000, scoped, tag = 'output window, operand 0']
    %14 = vsyncpa [#allocation3], 0
    %15 = vsyncpa [#allocation6], 0
    %16 = vsyncpa [#allocation9], 0
    %17 = vsyncpa [#allocation12], 0
    %18 = vsyncpa [#allocation4], 0
    %s19 = scalar_lea.sflag [#allocation4], 1
    %20 = vsyncpa %s19, 0
    loop: start=0, step=1, limit=4
    $region2: #{tpu_custom_call.1} parent=1 // loop_pre_header
      _
    $region3: #{tpu_custom_call.1} parent=1 // loop_header
      %s22 = sphi 0, %s26
      %p23 = scmp.ge.s32.totalorder %s22, 4
      %s30 = sphi 0, %s30
      %s32 = sphi 0, %s30
      %s33 = sphi 0, %s32
      %s47 = sphi 0, %s33
      %s51 = sphi 0, %s51
      %s53 = sphi 0, %s51
      %s54 = sphi 0, %s53
      %s68 = sphi 0, %s54
      %s72 = sphi 0, %s72
      %s74 = sphi 0, %s72
      %s75 = sphi 0, %s74
      %s89 = sphi 0, %s75
      %s93 = sphi 0, %s93
      %s95 = sphi 0, %s93
      %s96 = sphi 0, %s95
      %s110 = sphi 0, %s96
      %s114 = sphi 0, %s114
      %s116 = sphi 0, %s114
      %s117 = sphi 0, %s116
      %s131 = sphi 0, %s117
      %s135 = sphi 0, %s135
      %s137 = sphi 0, %s135
      %s138 = sphi 0, %s137
      %s152 = sphi 0, %s138
      %s156 = sphi 0, %s156
      %s158 = sphi 0, %s156
      %s159 = sphi 0, %s158
      %s173 = sphi 0, %s159
      %s177 = sphi 0, %s177
      %s179 = sphi 0, %s177
      %s180 = sphi 0, %s179
      %s194 = sphi 0, %s180
      %s198 = sphi 0, %s198
      %s200 = sphi 0, %s198
      %s201 = sphi 0, %s200
      %s215 = sphi 0, %s201
      %s221 = sphi 0, %s223
      %s224 = sphi 0, %s221
      %s225 = sphi 0, %s224
      %s241 = sphi 0, %s225
    $region4: #{tpu_custom_call.1} parent=1 // loop_header_branch
      %25 = sbr.rel (%p23) target = $region8
    $region5: #{tpu_custom_call.1} parent=1 // loop_body
      %s27 = ssub.s32 %s22, 1
      %s28 = ssub.s32 %s22, 2
      %s29 = sadd.s32 %s22, 1
      %s31 = sadd.s32 %s30, 1
      %p34 = scmp.eq.s32.totalorder %s22, 1
      %p35 = scmp.ne.s32.totalorder %s30, %s32
      %p36 = scmp.eq.s32.totalorder %s22, 0
      %p37 = por %p35, %p36
      %p38 = scmp.ne.s32.totalorder %s30, %s32
      %p39 = scmp.eq.s32.totalorder %s27, 1
      %p40 = por %p38, %p39
      %p41 = scmp.ne.s32.totalorder %s32, %s33
      %p42 = scmp.eq.s32.totalorder %s27, 0
      %p43 = por %p41, %p42
      %p44 = scmp.ne.s32.totalorder %s32, %s33
      %p45 = scmp.eq.s32.totalorder %s28, 1
      %p46 = por %p44, %p45
      %p48 = scmp.ne.s32.totalorder %s33, %s47
      %p49 = scmp.eq.s32.totalorder %s28, 0
      %p50 = por %p48, %p49
      %s52 = sadd.s32 %s51, 1
      %p55 = scmp.eq.s32.totalorder %s22, 1
      %p56 = scmp.ne.s32.totalorder %s51, %s53
      %p57 = scmp.eq.s32.totalorder %s22, 0
      %p58 = por %p56, %p57
      %p59 = scmp.ne.s32.totalorder %s51, %s53
      %p60 = scmp.eq.s32.totalorder %s27, 1
      %p61 = por %p59, %p60
      %p62 = scmp.ne.s32.totalorder %s53, %s54
      %p63 = scmp.eq.s32.totalorder %s27, 0
      %p64 = por %p62, %p63
      %p65 = scmp.ne.s32.totalorder %s53, %s54
      %p66 = scmp.eq.s32.totalorder %s28, 1
      %p67 = por %p65, %p66
      %p69 = scmp.ne.s32.totalorder %s54, %s68
      %p70 = scmp.eq.s32.totalorder %s28, 0
      %p71 = por %p69, %p70
      %s73 = sadd.s32 %s72, 1
      %p76 = scmp.eq.s32.totalorder %s22, 1
      %p77 = scmp.ne.s32.totalorder %s72, %s74
      %p78 = scmp.eq.s32.totalorder %s22, 0
      %p79 = por %p77, %p78
      %p80 = scmp.ne.s32.totalorder %s72, %s74
      %p81 = scmp.eq.s32.totalorder %s27, 1
      %p82 = por %p80, %p81
      %p83 = scmp.ne.s32.totalorder %s74, %s75
      %p84 = scmp.eq.s32.totalorder %s27, 0
      %p85 = por %p83, %p84
      %p86 = scmp.ne.s32.totalorder %s74, %s75
      %p87 = scmp.eq.s32.totalorder %s28, 1
      %p88 = por %p86, %p87
      %p90 = scmp.ne.s32.totalorder %s75, %s89
      %p91 = scmp.eq.s32.totalorder %s28, 0
      %p92 = por %p90, %p91
      %s94 = sadd.s32 %s93, 1
      %p97 = scmp.eq.s32.totalorder %s22, 1
      %p98 = scmp.ne.s32.totalorder %s93, %s95
      %p99 = scmp.eq.s32.totalorder %s22, 0
      %p100 = por %p98, %p99
      %p101 = scmp.ne.s32.totalorder %s93, %s95
      %p102 = scmp.eq.s32.totalorder %s27, 1
      %p103 = por %p101, %p102
      %p104 = scmp.ne.s32.totalorder %s95, %s96
      %p105 = scmp.eq.s32.totalorder %s27, 0
      %p106 = por %p104, %p105
      %p107 = scmp.ne.s32.totalorder %s95, %s96
      %p108 = scmp.eq.s32.totalorder %s28, 1
      %p109 = por %p107, %p108
      %p111 = scmp.ne.s32.totalorder %s96, %s110
      %p112 = scmp.eq.s32.totalorder %s28, 0
      %p113 = por %p111, %p112
      %s115 = sadd.s32 %s114, 1
      %p118 = scmp.eq.s32.totalorder %s22, 1
      %p119 = scmp.ne.s32.totalorder %s114, %s116
      %p120 = scmp.eq.s32.totalorder %s22, 0
      %p121 = por %p119, %p120
      %p122 = scmp.ne.s32.totalorder %s114, %s116
      %p123 = scmp.eq.s32.totalorder %s27, 1
      %p124 = por %p122, %p123
      %p125 = scmp.ne.s32.totalorder %s116, %s117
      %p126 = scmp.eq.s32.totalorder %s27, 0
      %p127 = por %p125, %p126
      %p128 = scmp.ne.s32.totalorder %s116, %s117
      %p129 = scmp.eq.s32.totalorder %s28, 1
      %p130 = por %p128, %p129
      %p132 = scmp.ne.s32.totalorder %s117, %s131
      %p133 = scmp.eq.s32.totalorder %s28, 0
      %p134 = por %p132, %p133
      %s136 = sadd.s32 %s135, 1
      %p139 = scmp.eq.s32.totalorder %s22, 1
      %p140 = scmp.ne.s32.totalorder %s135, %s137
      %p141 = scmp.eq.s32.totalorder %s22, 0
      %p142 = por %p140, %p141
      %p143 = scmp.ne.s32.totalorder %s135, %s137
      %p144 = scmp.eq.s32.totalorder %s27, 1
      %p145 = por %p143, %p144
      %p146 = scmp.ne.s32.totalorder %s137, %s138
      %p147 = scmp.eq.s32.totalorder %s27, 0
      %p148 = por %p146, %p147
      %p149 = scmp.ne.s32.totalorder %s137, %s138
      %p150 = scmp.eq.s32.totalorder %s28, 1
      %p151 = por %p149, %p150
      %p153 = scmp.ne.s32.totalorder %s138, %s152
      %p154 = scmp.eq.s32.totalorder %s28, 0
      %p155 = por %p153, %p154
      %s157 = sadd.s32 %s156, 1
      %p160 = scmp.eq.s32.totalorder %s22, 1
      %p161 = scmp.ne.s32.totalorder %s156, %s158
      %p162 = scmp.eq.s32.totalorder %s22, 0
      %p163 = por %p161, %p162
      %p164 = scmp.ne.s32.totalorder %s156, %s158
      %p165 = scmp.eq.s32.totalorder %s27, 1
      %p166 = por %p164, %p165
      %p167 = scmp.ne.s32.totalorder %s158, %s159
      %p168 = scmp.eq.s32.totalorder %s27, 0
      %p169 = por %p167, %p168
      %p170 = scmp.ne.s32.totalorder %s158, %s159
      %p171 = scmp.eq.s32.totalorder %s28, 1
      %p172 = por %p170, %p171
      %p174 = scmp.ne.s32.totalorder %s159, %s173
      %p175 = scmp.eq.s32.totalorder %s28, 0
      %p176 = por %p174, %p175
      %s178 = sadd.s32 %s177, 1
      %p181 = scmp.eq.s32.totalorder %s22, 1
      %p182 = scmp.ne.s32.totalorder %s177, %s179
      %p183 = scmp.eq.s32.totalorder %s22, 0
      %p184 = por %p182, %p183
      %p185 = scmp.ne.s32.totalorder %s177, %s179
      %p186 = scmp.eq.s32.totalorder %s27, 1
      %p187 = por %p185, %p186
      %p188 = scmp.ne.s32.totalorder %s179, %s180
      %p189 = scmp.eq.s32.totalorder %s27, 0
      %p190 = por %p188, %p189
      %p191 = scmp.ne.s32.totalorder %s179, %s180
      %p192 = scmp.eq.s32.totalorder %s28, 1
      %p193 = por %p191, %p192
      %p195 = scmp.ne.s32.totalorder %s180, %s194
      %p196 = scmp.eq.s32.totalorder %s28, 0
      %p197 = por %p195, %p196
      %s199 = sadd.s32 %s198, 1
      %p202 = scmp.eq.s32.totalorder %s22, 1
      %p203 = scmp.ne.s32.totalorder %s198, %s200
      %p204 = scmp.eq.s32.totalorder %s22, 0
      %p205 = por %p203, %p204
      %p206 = scmp.ne.s32.totalorder %s198, %s200
      %p207 = scmp.eq.s32.totalorder %s27, 1
      %p208 = por %p206, %p207
      %p209 = scmp.ne.s32.totalorder %s200, %s201
      %p210 = scmp.eq.s32.totalorder %s27, 0
      %p211 = por %p209, %p210
      %p212 = scmp.ne.s32.totalorder %s200, %s201
      %p213 = scmp.eq.s32.totalorder %s28, 1
      %p214 = por %p212, %p213
      %p216 = scmp.ne.s32.totalorder %s201, %s215
      %p217 = scmp.eq.s32.totalorder %s28, 0
      %p218 = por %p216, %p217
      %s219 = ssub.s32 %s22, %s29
      %p220 = scmp.eq.s32.totalorder %s219, 0
      %s222 = sadd.s32 %s221, 1
      %s223 = scalar_select %p220, %s221, %s222
      %p226 = pneg %p220
      %p227 = scmp.eq.s32.totalorder %s22, 1
      %p228 = por %p226, %p227
      %p229 = scmp.ne.s32.totalorder %s221, %s224
      %p230 = scmp.eq.s32.totalorder %s22, 0
      %p231 = por %p229, %p230
      %p232 = scmp.ne.s32.totalorder %s221, %s224
      %p233 = scmp.eq.s32.totalorder %s27, 1
      %p234 = por %p232, %p233
      %p235 = scmp.ne.s32.totalorder %s224, %s225
      %p236 = scmp.eq.s32.totalorder %s27, 0
      %p237 = por %p235, %p236
      %p238 = scmp.ne.s32.totalorder %s224, %s225
      %p239 = scmp.eq.s32.totalorder %s28, 1
      %p240 = por %p238, %p239
      %p242 = scmp.ne.s32.totalorder %s225, %s241
      %p243 = scmp.eq.s32.totalorder %s28, 0
      %p244 = por %p242, %p243
      %p245 = scmp.le.s32.totalorder 1, %s22
      %p246 = scmp.lt.s32.totalorder %s22, 3
      %p247 = pnand %p245, %p246
      %p248 = pneg %p247
      // Predicated region
      $region9: #{tpu_custom_call.1} parent=5 // pred_check
        _
      $region10: #{tpu_custom_call.1} parent=5 // pred_check_branch
        %250 = sbr.rel (%p247) target = $region12
      $region11: #{tpu_custom_call.1} parent=5 // pred_region
        %s251 = ssub.s32 %s22, 1
        // Predicated region
        $region13: #{tpu_custom_call.1} parent=11 // pred_check
          %p252 = pneg %p43
        $region14: #{tpu_custom_call.1} parent=11 // pred_check_branch
          %254 = sbr.rel (%p252) target = $region16
        $region15: #{tpu_custom_call.1} parent=11 // pred_region
          %s256 = ssub.s32 128, 128
          %257 = vsyncadd [#allocation3], %s256
          %s258 = sshll.u32 [#allocation2], 4
          %s259 = int_to_ptr.vmem [resolvable:$true] %s258
          %264 = dma.hbm_to_vmem [thread:$0]  %s0, 128, %s259, [#allocation3], 64, 64, 4
        $region16: #{tpu_custom_call.1} parent=11 // pred_fallthru
          _
        // Predicated region
        $region17: #{tpu_custom_call.1} parent=11 // pred_check
          %p265 = pneg %p64
        $region18: #{tpu_custom_call.1} parent=11 // pred_check_branch
          %267 = sbr.rel (%p265) target = $region20
        $region19: #{tpu_custom_call.1} parent=11 // pred_region
          %s269 = ssub.s32 128, 128
          %270 = vsyncadd [#allocation6], %s269
          %s271 = sshll.u32 [#allocation5], 4
          %s272 = int_to_ptr.vmem [resolvable:$true] %s271
          %277 = dma.hbm_to_vmem [thread:$0]  %s1, 128, %s272, [#allocation6], 64, 64, 4
        $region20: #{tpu_custom_call.1} parent=11 // pred_fallthru
          _
        // Predicated region
        $region21: #{tpu_custom_call.1} parent=11 // pred_check
          %p278 = pneg %p85
        $region22: #{tpu_custom_call.1} parent=11 // pred_check_branch
          %280 = sbr.rel (%p278) target = $region24
        $region23: #{tpu_custom_call.1} parent=11 // pred_region
          %s282 = ssub.s32 3072, 3072
          %283 = vsyncadd [#allocation6], %s282
          %s284 = sshll.u32 [#allocation7], 4
          %s285 = int_to_ptr.vmem [resolvable:$true] %s284
          %290 = dma.hbm_to_vmem [thread:$0]  %s2, 3072, %s285, [#allocation6], 192, 192, 12
        $region24: #{tpu_custom_call.1} parent=11 // pred_fallthru
          _
        // Predicated region
        $region25: #{tpu_custom_call.1} parent=11 // pred_check
          %p291 = pneg %p106
        $region26: #{tpu_custom_call.1} parent=11 // pred_check_branch
          %293 = sbr.rel (%p291) target = $region28
        $region27: #{tpu_custom_call.1} parent=11 // pred_region
          _
        $region28: #{tpu_custom_call.1} parent=11 // pred_fallthru
          _
        // Predicated region
        $region29: #{tpu_custom_call.1} parent=11 // pred_check
          %p294 = pneg %p127
        $region30: #{tpu_custom_call.1} parent=11 // pred_check_branch
          %296 = sbr.rel (%p294) target = $region32
        $region31: #{tpu_custom_call.1} parent=11 // pred_region
          %s298 = ssub.s32 3072, 3072
          %299 = vsyncadd [#allocation9], %s298
          %s300 = sshll.u32 [#allocation8], 4
          %s301 = int_to_ptr.vmem [resolvable:$true] %s300
          %306 = dma.hbm_to_vmem [thread:$0]  %s4, 3072, %s301, [#allocation9], 192, 192, 12
        $region32: #{tpu_custom_call.1} parent=11 // pred_fallthru
          _
        // Predicated region
        $region33: #{tpu_custom_call.1} parent=11 // pred_check
          %p307 = pneg %p148
        $region34: #{tpu_custom_call.1} parent=11 // pred_check_branch
          %309 = sbr.rel (%p307) target = $region36
        $region35: #{tpu_custom_call.1} parent=11 // pred_region
          _
        $region36: #{tpu_custom_call.1} parent=11 // pred_fallthru
          _
        // Predicated region
        $region37: #{tpu_custom_call.1} parent=11 // pred_check
          %p310 = pneg %p169
        $region38: #{tpu_custom_call.1} parent=11 // pred_check_branch
          %312 = sbr.rel (%p310) target = $region40
        $region39: #{tpu_custom_call.1} parent=11 // pred_region
          %s314 = ssub.s32 1024, 1024
          %315 = vsyncadd [#allocation9], %s314
          %s316 = sshll.u32 [#allocation10], 4
          %s317 = int_to_ptr.vmem [resolvable:$true] %s316
          %322 = dma.hbm_to_vmem [thread:$0]  %s6, 1024, %s317, [#allocation9], 64, 64, 4
        $region40: #{tpu_custom_call.1} parent=11 // pred_fallthru
          _
        // Predicated region
        $region41: #{tpu_custom_call.1} parent=11 // pred_check
          %p323 = pneg %p190
        $region42: #{tpu_custom_call.1} parent=11 // pred_check_branch
          %325 = sbr.rel (%p323) target = $region44
        $region43: #{tpu_custom_call.1} parent=11 // pred_region
          %s327 = ssub.s32 1024, 1024
          %328 = vsyncadd [#allocation12], %s327
          %s329 = sshll.u32 [#allocation11], 4
          %s330 = int_to_ptr.vmem [resolvable:$true] %s329
          %335 = dma.hbm_to_vmem [thread:$0]  %s7, 1024, %s330, [#allocation12], 64, 64, 4
        $region44: #{tpu_custom_call.1} parent=11 // pred_fallthru
          _
        // Predicated region
        $region45: #{tpu_custom_call.1} parent=11 // pred_check
          %p336 = pneg %p211
        $region46: #{tpu_custom_call.1} parent=11 // pred_check_branch
          %338 = sbr.rel (%p336) target = $region48
        $region47: #{tpu_custom_call.1} parent=11 // pred_region
          _
        $region48: #{tpu_custom_call.1} parent=11 // pred_fallthru
          _
      $region12: #{tpu_custom_call.1} parent=5 // pred_fallthru
        _
      %p339 = scmp.lt.s32.totalorder %s22, 2
      // Predicated region
      $region49: #{tpu_custom_call.1} parent=5 // pred_check
        %p340 = pneg %p339
      $region50: #{tpu_custom_call.1} parent=5 // pred_check_branch
        %342 = sbr.rel (%p340) target = $region52
      $region51: #{tpu_custom_call.1} parent=5 // pred_region
        _
      $region52: #{tpu_custom_call.1} parent=5 // pred_fallthru
        _
      %p343 = scmp.le.s32.totalorder 1, %s22
      %p344 = scmp.lt.s32.totalorder %s22, 3
      %p345 = pnand %p343, %p344
      %p346 = pneg %p345
      // Predicated region
      $region53: #{tpu_custom_call.1} parent=5 // pred_check
        _
      $region54: #{tpu_custom_call.1} parent=5 // pred_check_branch
        %348 = sbr.rel (%p345) target = $region56
      $region55: #{tpu_custom_call.1} parent=5 // pred_region
        %s349 = ssub.s32 %s22, 1
        // Predicated region
        $region57: #{tpu_custom_call.1} parent=55 // pred_check
          %p350 = pneg %p43
        $region58: #{tpu_custom_call.1} parent=55 // pred_check_branch
          %352 = sbr.rel (%p350) target = $region60
        $region59: #{tpu_custom_call.1} parent=55 // pred_region
          %353 = dma.done [#allocation3], 128
        $region60: #{tpu_custom_call.1} parent=55 // pred_fallthru
          _
        // Predicated region
        $region61: #{tpu_custom_call.1} parent=55 // pred_check
          %p354 = pneg %p64
        $region62: #{tpu_custom_call.1} parent=55 // pred_check_branch
          %356 = sbr.rel (%p354) target = $region64
        $region63: #{tpu_custom_call.1} parent=55 // pred_region
          %357 = dma.done [#allocation6], 128
        $region64: #{tpu_custom_call.1} parent=55 // pred_fallthru
          _
        // Predicated region
        $region65: #{tpu_custom_call.1} parent=55 // pred_check
          %p358 = pneg %p85
        $region66: #{tpu_custom_call.1} parent=55 // pred_check_branch
          %360 = sbr.rel (%p358) target = $region68
        $region67: #{tpu_custom_call.1} parent=55 // pred_region
          %361 = dma.done [#allocation6], 3072
        $region68: #{tpu_custom_call.1} parent=55 // pred_fallthru
          _
        // Predicated region
        $region69: #{tpu_custom_call.1} parent=55 // pred_check
          %p362 = pneg %p127
        $region70: #{tpu_custom_call.1} parent=55 // pred_check_branch
          %364 = sbr.rel (%p362) target = $region72
        $region71: #{tpu_custom_call.1} parent=55 // pred_region
          %365 = dma.done [#allocation9], 3072
        $region72: #{tpu_custom_call.1} parent=55 // pred_fallthru
          _
        // Predicated region
        $region73: #{tpu_custom_call.1} parent=55 // pred_check
          %p366 = pneg %p169
        $region74: #{tpu_custom_call.1} parent=55 // pred_check_branch
          %368 = sbr.rel (%p366) target = $region76
        $region75: #{tpu_custom_call.1} parent=55 // pred_region
          %369 = dma.done [#allocation9], 1024
        $region76: #{tpu_custom_call.1} parent=55 // pred_fallthru
          _
        // Predicated region
        $region77: #{tpu_custom_call.1} parent=55 // pred_check
          %p370 = pneg %p190
        $region78: #{tpu_custom_call.1} parent=55 // pred_check_branch
          %372 = sbr.rel (%p370) target = $region80
        $region79: #{tpu_custom_call.1} parent=55 // pred_region
          %373 = dma.done [#allocation12], 1024
        $region80: #{tpu_custom_call.1} parent=55 // pred_fallthru
          _
        %p374 = pneg %p43
        %p375 = pneg %p40
        %p376 = pneg %p64
        %p377 = pneg %p61
        %p378 = pneg %p85
        %p379 = pneg %p82
        %p380 = pneg %p106
        %p381 = pneg %p103
        %p382 = pneg %p127
        %p383 = pneg %p124
        %p384 = pneg %p148
        %p385 = pneg %p145
        %p386 = pneg %p169
        %p387 = pneg %p166
        %p388 = pneg %p190
        %p389 = pneg %p187
        %p390 = pneg %p211
        %p391 = pneg %p208
        %p392 = pneg %p237
        %p393 = pneg %p234
        %s394 = sand.u32 %s224, 1
        %s395 = scalar_lea.sflag [#allocation4], %s394
        %s396 = sand.u32 %s224, 1
        %s397 = smul.addr %s396, 16
        %s398 = scalar_lea.vmem [#allocation13], %s397
        %v400 = vlaneseq
        %v401 = vand.u32 %v400, 127
        %vm402 = vcmp.lt.s32.totalorder %v401, 2
        %p403 = scmp.eq.s32.totalorder %s27, 0
        // Predicated region
        $region81: #{tpu_custom_call.1} parent=55 // pred_check
          %p404 = pneg %p403
        $region82: #{tpu_custom_call.1} parent=55 // pred_check_branch
          %406 = sbr.rel (%p404) target = $region84
        $region83: #{tpu_custom_call.1} parent=55 // pred_region
          %v407 = vld [vmem:[#allocation2] sm:$0xf]
          %v408 = vld [vmem:[#allocation2 + $0x4] sm:$0xf]
          %v409 = vld [vmem:[#allocation7] sm:$0xff]
          %v410 = vld [vmem:[#allocation7 + $0x8] sm:$0xf]
          %v411 = vld [vmem:[#allocation7 + $0xc] sm:$0xff]
          %v412 = vld [vmem:[#allocation7 + $0x14] sm:$0xf]
          %v413 = vld [vmem:[#allocation7 + $0x18] sm:$0xff]
          %v414 = vld [vmem:[#allocation7 + $0x20] sm:$0xf]
          %v415 = vld [vmem:[#allocation7 + $0x24] sm:$0xff]
          %v416 = vld [vmem:[#allocation7 + $0x2c] sm:$0xf]
          %v417 = vld [vmem:[#allocation7 + $0x30] sm:$0xff]
          %v418 = vld [vmem:[#allocation7 + $0x38] sm:$0xf]
          %v419 = vld [vmem:[#allocation7 + $0x3c] sm:$0xff]
          %v420 = vld [vmem:[#allocation7 + $0x44] sm:$0xf]
          %v421 = vld [vmem:[#allocation7 + $0x48] sm:$0xff]
          %v422 = vld [vmem:[#allocation7 + $0x50] sm:$0xf]
          %v423 = vld [vmem:[#allocation7 + $0x54] sm:$0xff]
          %v424 = vld [vmem:[#allocation7 + $0x5c] sm:$0xf]
          %v425 = vld [vmem:[#allocation7 + $0x60] sm:$0xff]
          %v426 = vld [vmem:[#allocation7 + $0x68] sm:$0xf]
          %v427 = vld [vmem:[#allocation7 + $0x6c] sm:$0xff]
          %v428 = vld [vmem:[#allocation7 + $0x74] sm:$0xf]
          %v429 = vld [vmem:[#allocation7 + $0x78] sm:$0xff]
          %v430 = vld [vmem:[#allocation7 + $0x80] sm:$0xf]
          %v431 = vld [vmem:[#allocation7 + $0x84] sm:$0xff]
          %v432 = vld [vmem:[#allocation7 + $0x8c] sm:$0xf]
          %v433 = vld [vmem:[#allocation7 + $0x90] sm:$0xff]
          %v434 = vld [vmem:[#allocation7 + $0x98] sm:$0xf]
          %v435 = vld [vmem:[#allocation7 + $0x9c] sm:$0xff]
          %v436 = vld [vmem:[#allocation7 + $0xa4] sm:$0xf]
          %v437 = vld [vmem:[#allocation7 + $0xa8] sm:$0xff]
          %v438 = vld [vmem:[#allocation7 + $0xb0] sm:$0xf]
          %v439 = vld [vmem:[#allocation7 + $0xb4] sm:$0xff]
          %v440 = vld [vmem:[#allocation7 + $0xbc] sm:$0xf]
          %v441 = vld [vmem:[%s3] sm:$0x7]
          %v443 = vlaneseq
          %v444 = vshrl.u32 %v443, 7
          %v445 = vsub.s32 0, %v444
          %v446 = vrot.slane %v441, %v445
          %v447 = vlaneseq
          %v448 = vshrl.u32 %v447, 7
          %v449 = vsub.s32 1, %v448
          %v450 = vrot.slane %v441, %v449
          %v451 = vlaneseq
          %v452 = vshrl.u32 %v451, 7
          %v453 = vsub.s32 2, %v452
          %v454 = vrot.slane %v441, %v453
          %v460 = vunpack.c.l.b16 %v407
          %v461 = vunpack.c.l.b16 %v408
          %v462 = vpack.c.b16 %v461, %v460
          %v496 = vunpack.c.l.b16 %v409
          %v497 = vunpack.c.h.b16 %v409
          %v498 = vunpack.c.l.b16 %v410
          %v499 = vunpack.c.l.b16 %v411
          %v500 = vunpack.c.h.b16 %v411
          %v501 = vunpack.c.l.b16 %v412
          %v502 = vunpack.c.l.b16 %v413
          %v503 = vunpack.c.h.b16 %v413
          %v504 = vunpack.c.l.b16 %v414
          %v505 = vunpack.c.l.b16 %v415
          %v506 = vunpack.c.h.b16 %v415
          %v507 = vunpack.c.l.b16 %v416
          %v508 = vunpack.c.l.b16 %v417
          %v509 = vunpack.c.h.b16 %v417
          %v510 = vunpack.c.l.b16 %v418
          %v511 = vunpack.c.l.b16 %v419
          %v512 = vunpack.c.h.b16 %v419
          %v513 = vunpack.c.l.b16 %v420
          %v514 = vunpack.c.l.b16 %v421
          %v515 = vunpack.c.h.b16 %v421
          %v516 = vunpack.c.l.b16 %v422
          %v517 = vunpack.c.l.b16 %v423
          %v518 = vunpack.c.h.b16 %v423
          %v519 = vunpack.c.l.b16 %v424
          %v520 = vunpack.c.l.b16 %v425
          %v521 = vunpack.c.h.b16 %v425
          %v522 = vunpack.c.l.b16 %v426
          %v523 = vunpack.c.l.b16 %v427
          %v524 = vunpack.c.h.b16 %v427
          %v525 = vunpack.c.l.b16 %v428
          %v526 = vunpack.c.l.b16 %v429
          %v527 = vunpack.c.h.b16 %v429
          %v528 = vunpack.c.l.b16 %v430
          %v529 = vunpack.c.l.b16 %v431
          %v530 = vunpack.c.h.b16 %v431
          %v531 = vunpack.c.l.b16 %v432
          %v532 = vunpack.c.l.b16 %v433
          %v533 = vunpack.c.h.b16 %v433
          %v534 = vunpack.c.l.b16 %v434
          %v535 = vunpack.c.l.b16 %v435
          %v536 = vunpack.c.h.b16 %v435
          %v537 = vunpack.c.l.b16 %v436
          %v538 = vunpack.c.l.b16 %v437
          %v539 = vunpack.c.h.b16 %v437
          %v540 = vunpack.c.l.b16 %v438
          %v541 = vunpack.c.l.b16 %v439
          %v542 = vunpack.c.h.b16 %v439
          %v543 = vunpack.c.l.b16 %v440
          %v544 = vpack.c.b16 %v499, %v496
          %v545 = vpack.c.b16 %v500, %v497
          %v546 = vpack.c.b16 %v501, %v498
          %v547 = vpack.c.b16 %v505, %v502
          %v548 = vpack.c.b16 %v506, %v503
          %v549 = vpack.c.b16 %v507, %v504
          %v550 = vpack.c.b16 %v511, %v508
          %v551 = vpack.c.b16 %v512, %v509
          %v552 = vpack.c.b16 %v513, %v510
          %v553 = vpack.c.b16 %v517, %v514
          %v554 = vpack.c.b16 %v518, %v515
          %v555 = vpack.c.b16 %v519, %v516
          %v556 = vpack.c.b16 %v523, %v520
          %v557 = vpack.c.b16 %v524, %v521
          %v558 = vpack.c.b16 %v525, %v522
          %v559 = vpack.c.b16 %v529, %v526
          %v560 = vpack.c.b16 %v530, %v527
          %v561 = vpack.c.b16 %v531, %v528
          %v562 = vpack.c.b16 %v535, %v532
          %v563 = vpack.c.b16 %v536, %v533
          %v564 = vpack.c.b16 %v537, %v534
          %v565 = vpack.c.b16 %v541, %v538
          %v566 = vpack.c.b16 %v542, %v539
          %v567 = vpack.c.b16 %v543, %v540
          %592 = vmatprep.subr.bf16.mxu0 %v545
          %593 = vmatpush1.bf16.msra.mxu0 %v544
          %594 = vmatprep.subr.bf16.mxu0 %v548
          %595 = vmatpush1.bf16.msra.mxu0 %v547
          %596 = vmatprep.subr.bf16.mxu0 %v551
          %597 = vmatpush1.bf16.msra.mxu0 %v550
          %598 = vmatprep.subr.bf16.mxu0 %v554
          %599 = vmatpush1.bf16.msra.mxu0 %v553
          %600 = vmatprep.subr.bf16.mxu0 %v557
          %601 = vmatpush1.bf16.msra.mxu0 %v556
          %602 = vmatprep.subr.bf16.mxu0 %v560
          %603 = vmatpush1.bf16.msra.mxu0 %v559
          %604 = vmatprep.subr.bf16.mxu0 %v563
          %605 = vmatpush1.bf16.msra.mxu0 %v562
          %606 = vmatprep.subr.bf16.mxu0 %v566
          %607 = vmatpush1.bf16.msra.mxu0 %v565
          %608 = vmatprep.subr.bf16.mxu0 0
          %609 = vmatpush1.bf16.msra.mxu0 0
          %610 = vmatprep.subr.bf16.mxu0 0
          %611 = vmatpush1.bf16.msra.mxu0 0
          %612 = vmatprep.subr.bf16.mxu0 0
          %613 = vmatpush1.bf16.msra.mxu0 0
          %614 = vmatprep.subr.bf16.mxu0 0
          %615 = vmatpush1.bf16.msra.mxu0 0
          %616 = vmatprep.subr.bf16.mxu0 0
          %617 = vmatpush1.bf16.msra.mxu0 0
          %618 = vmatprep.subr.bf16.mxu0 0
          %619 = vmatpush1.bf16.msra.mxu0 0
          %620 = vmatprep.subr.bf16.mxu0 0
          %621 = vmatpush1.bf16.msra.mxu0 0
          %622 = vmatprep.subr.bf16.mxu0 0
          %623 = vmatpush1.bf16.msra.mxu0 0
          %624 = vmatprep.mubr.bf16.mxu0 0
          %625 = vmatmul.mubr.bf16.gmra.mrb[0].mxu0 %v462
          %v626 = vpop.f32.mrb[0].mxu0
          %v627 = vadd.f32 %v446, %v626
          %v628 = vpop.f32.mrb[0].mxu0
          %v629 = vadd.f32 %v450, %v628
          %v630 = vpop.f32.mrb[0].mxu0
          %v631 = vadd.f32 %v446, %v630
          %v632 = vpop.f32.mrb[0].mxu0
          %v633 = vadd.f32 %v450, %v632
          %634 = vdwg.mxu0
          %635 = vmatprep.subr.bf16.mxu0 0
          %636 = vmatpush1.bf16.msra.mxu0 %v546
          %637 = vmatprep.subr.bf16.mxu0 0
          %638 = vmatpush1.bf16.msra.mxu0 %v549
          %639 = vmatprep.subr.bf16.mxu0 0
          %640 = vmatpush1.bf16.msra.mxu0 %v552
          %641 = vmatprep.subr.bf16.mxu0 0
          %642 = vmatpush1.bf16.msra.mxu0 %v555
          %643 = vmatprep.subr.bf16.mxu0 0
          %644 = vmatpush1.bf16.msra.mxu0 %v558
          %645 = vmatprep.subr.bf16.mxu0 0
          %646 = vmatpush1.bf16.msra.mxu0 %v561
          %647 = vmatprep.subr.bf16.mxu0 0
          %648 = vmatpush1.bf16.msra.mxu0 %v564
          %649 = vmatprep.subr.bf16.mxu0 0
          %650 = vmatpush1.bf16.msra.mxu0 %v567
          %651 = vmatprep.subr.bf16.mxu0 0
          %652 = vmatpush1.bf16.msra.mxu0 0
          %653 = vmatprep.subr.bf16.mxu0 0
          %654 = vmatpush1.bf16.msra.mxu0 0
          %655 = vmatprep.subr.bf16.mxu0 0
          %656 = vmatpush1.bf16.msra.mxu0 0
          %657 = vmatprep.subr.bf16.mxu0 0
          %658 = vmatpush1.bf16.msra.mxu0 0
          %659 = vmatprep.subr.bf16.mxu0 0
          %660 = vmatpush1.bf16.msra.mxu0 0
          %661 = vmatprep.subr.bf16.mxu0 0
          %662 = vmatpush1.bf16.msra.mxu0 0
          %663 = vmatprep.subr.bf16.mxu0 0
          %664 = vmatpush1.bf16.msra.mxu0 0
          %665 = vmatprep.subr.bf16.mxu0 0
          %666 = vmatpush1.bf16.msra.mxu0 0
          %667 = vmatprep.mubr.bf16.mxu0 0
          %668 = vmatmul.mubr.bf16.gmra.mrb[0].mxu0 %v462
          %v669 = vpop.f32.mrb[0].mxu0
          %v670 = vadd.f32 %v454, %v669
          %v671 = vpop.f32.mrb[0].mxu0
          %v672 = vpop.f32.mrb[0].mxu0
          %v673 = vadd.f32 %v454, %v672
          %v674 = vpop.f32.mrb[0].mxu0
          %675 = vdwg.mxu0
          %v676 = vpack.c.bf16 %v631, %v627
          %v677 = vpack.c.bf16 %v633, %v629
          %678 = vmatprep.subr.bf16.mxu0 0
          %679 = vmatpush1.bf16.xpose.msra.mxu0 %v677
          %680 = vmatprep.subr.bf16.mxu0 0
          %681 = vmatpush1.bf16.xpose.msra.mxu0 0
          %682 = vmatprep.subr.bf16.mxu0 0
          %683 = vmatpush1.bf16.xpose.msra.mxu0 0
          %684 = vmatprep.subr.bf16.mxu0 0
          %685 = vmatpush1.bf16.xpose.msra.mxu0 0
          %686 = vmatprep.subr.bf16.mxu0 0
          %687 = vmatpush1.bf16.xpose.msra.mxu0 0
          %688 = vmatprep.subr.bf16.mxu0 0
          %689 = vmatpush1.bf16.xpose.msra.mxu0 0
          %690 = vmatprep.subr.bf16.mxu0 0
          %691 = vmatpush1.bf16.xpose.msra.mxu0 0
          %692 = vmatprep.subr.bf16.mxu0 0
          %693 = vmatpush1.bf16.xpose.msra.mxu0 0
          %694 = vmatprep.subr.bf16.mxu0 0
          %695 = vmatpush1.bf16.xpose.msra.mxu0 0
          %696 = vmatprep.subr.bf16.mxu0 0
          %697 = vmatpush1.bf16.xpose.msra.mxu0 0
          %698 = vmatprep.subr.bf16.mxu0 0
          %699 = vmatpush1.bf16.xpose.msra.mxu0 0
          %700 = vmatprep.subr.bf16.mxu0 0
          %701 = vmatpush1.bf16.xpose.msra.mxu0 0
          %702 = vmatprep.subr.bf16.mxu0 0
          %703 = vmatpush1.bf16.xpose.msra.mxu0 0
          %704 = vmatprep.subr.bf16.mxu0 0
          %705 = vmatpush1.bf16.xpose.msra.mxu0 0
          %706 = vmatprep.subr.bf16.mxu0 0
          %707 = vmatpush1.bf16.xpose.msra.mxu0 0
          %708 = vmatprep.subr.bf16.mxu0 0
          %709 = vmatpush1.bf16.xpose.msra.mxu0 0
          %710 = vmatprep.mubr.bf16.mxu0 0
          %711 = vmatmul.mubr.bf16.gmra.mrb[0].mxu0 %v676
          %v712 = vpop.f32.mrb[0].mxu0
          %v713 = vadd.f32 0.0, %v712
          %v714 = vpop.f32.mrb[0].mxu0
          %v715 = vpop.f32.mrb[0].mxu0
          %v716 = vadd.f32 0.0, %v715
          %v717 = vpop.f32.mrb[0].mxu0
          %718 = vdwg.mxu0
          %v719 = vsel %vm402, %v713, -1e+30
          %v720 = vsel %vm402, %v716, -1e+30
          %vm721 = vcmask 130048
          %v722 = vsel %vm721, %v719, -inf
          %723 = vmax.xlane.f32.xlu0 %v722
          %v724 = vpop.xlane.xlu0 %723
          %v725 = vsel %vm721, %v720, -inf
          %726 = vmax.xlane.f32.xlu0 %v725
          %v727 = vpop.xlane.xlu0 %726
          %v728 = vsub.f32 %v719, %v724
          %v729 = vsub.f32 %v720, %v727
          %v730 = vmul.f32 %v728, 1.442695
          %v731 = vpow.pop %v730
          %v732 = vmul.f32 %v729, 1.442695
          %v733 = vpow.pop %v732
          %v734 = vsel %vm721, %v731, 0.0
          %735 = vadd.xlane.f32.xlu0 %v734
          %v736 = vpop.xlane.xlu0 %735
          %v737 = vsel %vm721, %v733, 0.0
          %738 = vadd.xlane.f32.xlu0 %v737
          %v739 = vpop.xlane.xlu0 %738
          %v740 = vrcp.pop %v736
          %v741 = vrcp.pop %v739
          %v742 = vmul.f32 %v731, %v740
          %v743 = vmul.f32 %v733, %v741
          %v744 = vpack.c.bf16 %v743, %v742
          %v745 = vpack.c.bf16 %v673, %v670
          %v747 = vsel %vm721, %v744, 0
          %749 = vmatprep.subr.bf16.mxu0 0
          %750 = vmatpush1.bf16.msra.mxu0 %v745
          %751 = vmatprep.subr.bf16.mxu0 0
          %752 = vmatpush1.bf16.msra.mxu0 0
          %753 = vmatprep.subr.bf16.mxu0 0
          %754 = vmatpush1.bf16.msra.mxu0 0
          %755 = vmatprep.subr.bf16.mxu0 0
          %756 = vmatpush1.bf16.msra.mxu0 0
          %757 = vmatprep.subr.bf16.mxu0 0
          %758 = vmatpush1.bf16.msra.mxu0 0
          %759 = vmatprep.subr.bf16.mxu0 0
          %760 = vmatpush1.bf16.msra.mxu0 0
          %761 = vmatprep.subr.bf16.mxu0 0
          %762 = vmatpush1.bf16.msra.mxu0 0
          %763 = vmatprep.subr.bf16.mxu0 0
          %764 = vmatpush1.bf16.msra.mxu0 0
          %765 = vmatprep.subr.bf16.mxu0 0
          %766 = vmatpush1.bf16.msra.mxu0 0
          %767 = vmatprep.subr.bf16.mxu0 0
          %768 = vmatpush1.bf16.msra.mxu0 0
          %769 = vmatprep.subr.bf16.mxu0 0
          %770 = vmatpush1.bf16.msra.mxu0 0
          %771 = vmatprep.subr.bf16.mxu0 0
          %772 = vmatpush1.bf16.msra.mxu0 0
          %773 = vmatprep.subr.bf16.mxu0 0
          %774 = vmatpush1.bf16.msra.mxu0 0
          %775 = vmatprep.subr.bf16.mxu0 0
          %776 = vmatpush1.bf16.msra.mxu0 0
          %777 = vmatprep.subr.bf16.mxu0 0
          %778 = vmatpush1.bf16.msra.mxu0 0
          %779 = vmatprep.subr.bf16.mxu0 0
          %780 = vmatpush1.bf16.msra.mxu0 0
          %781 = vmatprep.mubr.bf16.mxu0 0
          %782 = vmatmul.mubr.bf16.gmra.mrb[0].mxu0 %v747
          %v783 = vpop.f32.mrb[0].mxu0
          %v784 = vadd.f32 0.0, %v783
          %v785 = vpop.f32.mrb[0].mxu0
          %v786 = vpop.f32.mrb[0].mxu0
          %v787 = vadd.f32 0.0, %v786
          %v788 = vpop.f32.mrb[0].mxu0
          %789 = vdwg.mxu0
          %v790 = vpack.c.bf16 %v787, %v784
          %v791 = vld [vmem:[#allocation10] sm:$0xf]
          %v792 = vld [vmem:[#allocation10 + $0x4] sm:$0xf]
          %v793 = vld [vmem:[#allocation10 + $0x8] sm:$0xf]
          %v794 = vld [vmem:[#allocation10 + $0xc] sm:$0xf]
          %v795 = vld [vmem:[#allocation10 + $0x10] sm:$0xf]
          %v796 = vld [vmem:[#allocation10 + $0x14] sm:$0xf]
          %v797 = vld [vmem:[#allocation10 + $0x18] sm:$0xf]
          %v798 = vld [vmem:[#allocation10 + $0x1c] sm:$0xf]
          %v799 = vld [vmem:[#allocation10 + $0x20] sm:$0xf]
          %v800 = vld [vmem:[#allocation10 + $0x24] sm:$0xf]
          %v801 = vld [vmem:[#allocation10 + $0x28] sm:$0xf]
          %v802 = vld [vmem:[#allocation10 + $0x2c] sm:$0xf]
          %v803 = vld [vmem:[#allocation10 + $0x30] sm:$0xf]
          %v804 = vld [vmem:[#allocation10 + $0x34] sm:$0xf]
          %v805 = vld [vmem:[#allocation10 + $0x38] sm:$0xf]
          %v806 = vld [vmem:[#allocation10 + $0x3c] sm:$0xf]
          %v807 = vld [vmem:[%s8] sm:$0x1]
          %v809 = vlaneseq
          %v810 = vshrl.u32 %v809, 7
          %v811 = vsub.s32 0, %v810
          %v812 = vrot.slane %v807, %v811
          %v830 = vunpack.c.l.b16 %v791
          %v831 = vunpack.c.l.b16 %v792
          %v832 = vunpack.c.l.b16 %v793
          %v833 = vunpack.c.l.b16 %v794
          %v834 = vunpack.c.l.b16 %v795
          %v835 = vunpack.c.l.b16 %v796
          %v836 = vunpack.c.l.b16 %v797
          %v837 = vunpack.c.l.b16 %v798
          %v838 = vunpack.c.l.b16 %v799
          %v839 = vunpack.c.l.b16 %v800
          %v840 = vunpack.c.l.b16 %v801
          %v841 = vunpack.c.l.b16 %v802
          %v842 = vunpack.c.l.b16 %v803
          %v843 = vunpack.c.l.b16 %v804
          %v844 = vunpack.c.l.b16 %v805
          %v845 = vunpack.c.l.b16 %v806
          %v846 = vpack.c.b16 %v831, %v830
          %v847 = vpack.c.b16 %v833, %v832
          %v848 = vpack.c.b16 %v835, %v834
          %v849 = vpack.c.b16 %v837, %v836
          %v850 = vpack.c.b16 %v839, %v838
          %v851 = vpack.c.b16 %v841, %v840
          %v852 = vpack.c.b16 %v843, %v842
          %v853 = vpack.c.b16 %v845, %v844
          %862 = vmatprep.subr.bf16.mxu0 0
          %863 = vmatpush1.bf16.msra.mxu0 %v846
          %864 = vmatprep.subr.bf16.mxu0 0
          %865 = vmatpush1.bf16.msra.mxu0 %v847
          %866 = vmatprep.subr.bf16.mxu0 0
          %867 = vmatpush1.bf16.msra.mxu0 %v848
          %868 = vmatprep.subr.bf16.mxu0 0
          %869 = vmatpush1.bf16.msra.mxu0 %v849
          %870 = vmatprep.subr.bf16.mxu0 0
          %871 = vmatpush1.bf16.msra.mxu0 %v850
          %872 = vmatprep.subr.bf16.mxu0 0
          %873 = vmatpush1.bf16.msra.mxu0 %v851
          %874 = vmatprep.subr.bf16.mxu0 0
          %875 = vmatpush1.bf16.msra.mxu0 %v852
          %876 = vmatprep.subr.bf16.mxu0 0
          %877 = vmatpush1.bf16.msra.mxu0 %v853
          %878 = vmatprep.subr.bf16.mxu0 0
          %879 = vmatpush1.bf16.msra.mxu0 0
          %880 = vmatprep.subr.bf16.mxu0 0
          %881 = vmatpush1.bf16.msra.mxu0 0
          %882 = vmatprep.subr.bf16.mxu0 0
          %883 = vmatpush1.bf16.msra.mxu0 0
          %884 = vmatprep.subr.bf16.mxu0 0
          %885 = vmatpush1.bf16.msra.mxu0 0
          %886 = vmatprep.subr.bf16.mxu0 0
          %887 = vmatpush1.bf16.msra.mxu0 0
          %888 = vmatprep.subr.bf16.mxu0 0
          %889 = vmatpush1.bf16.msra.mxu0 0
          %890 = vmatprep.subr.bf16.mxu0 0
          %891 = vmatpush1.bf16.msra.mxu0 0
          %892 = vmatprep.subr.bf16.mxu0 0
          %893 = vmatpush1.bf16.msra.mxu0 0
          %894 = vmatprep.mubr.bf16.mxu0 0
          %895 = vmatmul.mubr.bf16.gmra.mrb[0].mxu0 %v790
          %v896 = vpop.f32.mrb[0].mxu0
          %v897 = vadd.f32 %v812, %v896
          %v898 = vpop.f32.mrb[0].mxu0
          %v899 = vpop.f32.mrb[0].mxu0
          %v900 = vadd.f32 %v812, %v899
          %v901 = vpop.f32.mrb[0].mxu0
          %902 = vdwg.mxu0
          %903 = vst [vmem:[%s398] sm:$0xff] %v897
          %904 = vst [vmem:[%s398 + $0x8] sm:$0xff] %v900
        $region84: #{tpu_custom_call.1} parent=55 // pred_fallthru
          _
        %p905 = scmp.eq.s32.totalorder %s27, 1
        // Predicated region
        $region85: #{tpu_custom_call.1} parent=55 // pred_check
          %p906 = pneg %p905
        $region86: #{tpu_custom_call.1} parent=55 // pred_check_branch
          %908 = sbr.rel (%p906) target = $region88
        $region87: #{tpu_custom_call.1} parent=55 // pred_region
          %v909 = vld [vmem:[#allocation5] sm:$0xf]
          %v910 = vld [vmem:[#allocation5 + $0x4] sm:$0xf]
          %v911 = vld [vmem:[#allocation8] sm:$0xff]
          %v912 = vld [vmem:[#allocation8 + $0x8] sm:$0xf]
          %v913 = vld [vmem:[#allocation8 + $0xc] sm:$0xff]
          %v914 = vld [vmem:[#allocation8 + $0x14] sm:$0xf]
          %v915 = vld [vmem:[#allocation8 + $0x18] sm:$0xff]
          %v916 = vld [vmem:[#allocation8 + $0x20] sm:$0xf]
          %v917 = vld [vmem:[#allocation8 + $0x24] sm:$0xff]
          %v918 = vld [vmem:[#allocation8 + $0x2c] sm:$0xf]
          %v919 = vld [vmem:[#allocation8 + $0x30] sm:$0xff]
          %v920 = vld [vmem:[#allocation8 + $0x38] sm:$0xf]
          %v921 = vld [vmem:[#allocation8 + $0x3c] sm:$0xff]
          %v922 = vld [vmem:[#allocation8 + $0x44] sm:$0xf]
          %v923 = vld [vmem:[#allocation8 + $0x48] sm:$0xff]
          %v924 = vld [vmem:[#allocation8 + $0x50] sm:$0xf]
          %v925 = vld [vmem:[#allocation8 + $0x54] sm:$0xff]
          %v926 = vld [vmem:[#allocation8 + $0x5c] sm:$0xf]
          %v927 = vld [vmem:[#allocation8 + $0x60] sm:$0xff]
          %v928 = vld [vmem:[#allocation8 + $0x68] sm:$0xf]
          %v929 = vld [vmem:[#allocation8 + $0x6c] sm:$0xff]
          %v930 = vld [vmem:[#allocation8 + $0x74] sm:$0xf]
          %v931 = vld [vmem:[#allocation8 + $0x78] sm:$0xff]
          %v932 = vld [vmem:[#allocation8 + $0x80] sm:$0xf]
          %v933 = vld [vmem:[#allocation8 + $0x84] sm:$0xff]
          %v934 = vld [vmem:[#allocation8 + $0x8c] sm:$0xf]
          %v935 = vld [vmem:[#allocation8 + $0x90] sm:$0xff]
          %v936 = vld [vmem:[#allocation8 + $0x98] sm:$0xf]
          %v937 = vld [vmem:[#allocation8 + $0x9c] sm:$0xff]
          %v938 = vld [vmem:[#allocation8 + $0xa4] sm:$0xf]
          %v939 = vld [vmem:[#allocation8 + $0xa8] sm:$0xff]
          %v940 = vld [vmem:[#allocation8 + $0xb0] sm:$0xf]
          %v941 = vld [vmem:[#allocation8 + $0xb4] sm:$0xff]
          %v942 = vld [vmem:[#allocation8 + $0xbc] sm:$0xf]
          %v943 = vld [vmem:[%s5] sm:$0x7]
          %v945 = vlaneseq
          %v946 = vshrl.u32 %v945, 7
          %v947 = vsub.s32 0, %v946
          %v948 = vrot.slane %v943, %v947
          %v949 = vlaneseq
          %v950 = vshrl.u32 %v949, 7
          %v951 = vsub.s32 1, %v950
          %v952 = vrot.slane %v943, %v951
          %v953 = vlaneseq
          %v954 = vshrl.u32 %v953, 7
          %v955 = vsub.s32 2, %v954
          %v956 = vrot.slane %v943, %v955
          %v962 = vunpack.c.l.b16 %v909
          %v963 = vunpack.c.l.b16 %v910
          %v964 = vpack.c.b16 %v963, %v962
          %v998 = vunpack.c.l.b16 %v911
          %v999 = vunpack.c.h.b16 %v911
          %v1000 = vunpack.c.l.b16 %v912
          %v1001 = vunpack.c.l.b16 %v913
          %v1002 = vunpack.c.h.b16 %v913
          %v1003 = vunpack.c.l.b16 %v914
          %v1004 = vunpack.c.l.b16 %v915
          %v1005 = vunpack.c.h.b16 %v915
          %v1006 = vunpack.c.l.b16 %v916
          %v1007 = vunpack.c.l.b16 %v917
          %v1008 = vunpack.c.h.b16 %v917
          %v1009 = vunpack.c.l.b16 %v918
          %v1010 = vunpack.c.l.b16 %v919
          %v1011 = vunpack.c.h.b16 %v919
          %v1012 = vunpack.c.l.b16 %v920
          %v1013 = vunpack.c.l.b16 %v921
          %v1014 = vunpack.c.h.b16 %v921
          %v1015 = vunpack.c.l.b16 %v922
          %v1016 = vunpack.c.l.b16 %v923
          %v1017 = vunpack.c.h.b16 %v923
          %v1018 = vunpack.c.l.b16 %v924
          %v1019 = vunpack.c.l.b16 %v925
          %v1020 = vunpack.c.h.b16 %v925
          %v1021 = vunpack.c.l.b16 %v926
          %v1022 = vunpack.c.l.b16 %v927
          %v1023 = vunpack.c.h.b16 %v927
          %v1024 = vunpack.c.l.b16 %v928
          %v1025 = vunpack.c.l.b16 %v929
          %v1026 = vunpack.c.h.b16 %v929
          %v1027 = vunpack.c.l.b16 %v930
          %v1028 = vunpack.c.l.b16 %v931
          %v1029 = vunpack.c.h.b16 %v931
          %v1030 = vunpack.c.l.b16 %v932
          %v1031 = vunpack.c.l.b16 %v933
          %v1032 = vunpack.c.h.b16 %v933
          %v1033 = vunpack.c.l.b16 %v934
          %v1034 = vunpack.c.l.b16 %v935
          %v1035 = vunpack.c.h.b16 %v935
          %v1036 = vunpack.c.l.b16 %v936
          %v1037 = vunpack.c.l.b16 %v937
          %v1038 = vunpack.c.h.b16 %v937
          %v1039 = vunpack.c.l.b16 %v938
          %v1040 = vunpack.c.l.b16 %v939
          %v1041 = vunpack.c.h.b16 %v939
          %v1042 = vunpack.c.l.b16 %v940
          %v1043 = vunpack.c.l.b16 %v941
          %v1044 = vunpack.c.h.b16 %v941
          %v1045 = vunpack.c.l.b16 %v942
          %v1046 = vpack.c.b16 %v1001, %v998
          %v1047 = vpack.c.b16 %v1002, %v999
          %v1048 = vpack.c.b16 %v1003, %v1000
          %v1049 = vpack.c.b16 %v1007, %v1004
          %v1050 = vpack.c.b16 %v1008, %v1005
          %v1051 = vpack.c.b16 %v1009, %v1006
          %v1052 = vpack.c.b16 %v1013, %v1010
          %v1053 = vpack.c.b16 %v1014, %v1011
          %v1054 = vpack.c.b16 %v1015, %v1012
          %v1055 = vpack.c.b16 %v1019, %v1016
          %v1056 = vpack.c.b16 %v1020, %v1017
          %v1057 = vpack.c.b16 %v1021, %v1018
          %v1058 = vpack.c.b16 %v1025, %v1022
          %v1059 = vpack.c.b16 %v1026, %v1023
          %v1060 = vpack.c.b16 %v1027, %v1024
          %v1061 = vpack.c.b16 %v1031, %v1028
          %v1062 = vpack.c.b16 %v1032, %v1029
          %v1063 = vpack.c.b16 %v1033, %v1030
          %v1064 = vpack.c.b16 %v1037, %v1034
          %v1065 = vpack.c.b16 %v1038, %v1035
          %v1066 = vpack.c.b16 %v1039, %v1036
          %v1067 = vpack.c.b16 %v1043, %v1040
          %v1068 = vpack.c.b16 %v1044, %v1041
          %v1069 = vpack.c.b16 %v1045, %v1042
          %1094 = vmatprep.subr.bf16.mxu0 %v1047
          %1095 = vmatpush1.bf16.msra.mxu0 %v1046
          %1096 = vmatprep.subr.bf16.mxu0 %v1050
          %1097 = vmatpush1.bf16.msra.mxu0 %v1049
          %1098 = vmatprep.subr.bf16.mxu0 %v1053
          %1099 = vmatpush1.bf16.msra.mxu0 %v1052
          %1100 = vmatprep.subr.bf16.mxu0 %v1056
          %1101 = vmatpush1.bf16.msra.mxu0 %v1055
          %1102 = vmatprep.subr.bf16.mxu0 %v1059
          %1103 = vmatpush1.bf16.msra.mxu0 %v1058
          %1104 = vmatprep.subr.bf16.mxu0 %v1062
          %1105 = vmatpush1.bf16.msra.mxu0 %v1061
          %1106 = vmatprep.subr.bf16.mxu0 %v1065
          %1107 = vmatpush1.bf16.msra.mxu0 %v1064
          %1108 = vmatprep.subr.bf16.mxu0 %v1068
          %1109 = vmatpush1.bf16.msra.mxu0 %v1067
          %1110 = vmatprep.subr.bf16.mxu0 0
          %1111 = vmatpush1.bf16.msra.mxu0 0
          %1112 = vmatprep.subr.bf16.mxu0 0
          %1113 = vmatpush1.bf16.msra.mxu0 0
          %1114 = vmatprep.subr.bf16.mxu0 0
          %1115 = vmatpush1.bf16.msra.mxu0 0
          %1116 = vmatprep.subr.bf16.mxu0 0
          %1117 = vmatpush1.bf16.msra.mxu0 0
          %1118 = vmatprep.subr.bf16.mxu0 0
          %1119 = vmatpush1.bf16.msra.mxu0 0
          %1120 = vmatprep.subr.bf16.mxu0 0
          %1121 = vmatpush1.bf16.msra.mxu0 0
          %1122 = vmatprep.subr.bf16.mxu0 0
          %1123 = vmatpush1.bf16.msra.mxu0 0
          %1124 = vmatprep.subr.bf16.mxu0 0
          %1125 = vmatpush1.bf16.msra.mxu0 0
          %1126 = vmatprep.mubr.bf16.mxu0 0
          %1127 = vmatmul.mubr.bf16.gmra.mrb[0].mxu0 %v964
          %v1128 = vpop.f32.mrb[0].mxu0
          %v1129 = vadd.f32 %v948, %v1128
          %v1130 = vpop.f32.mrb[0].mxu0
          %v1131 = vadd.f32 %v952, %v1130
          %v1132 = vpop.f32.mrb[0].mxu0
          %v1133 = vadd.f32 %v948, %v1132
          %v1134 = vpop.f32.mrb[0].mxu0
          %v1135 = vadd.f32 %v952, %v1134
          %1136 = vdwg.mxu0
          %1137 = vmatprep.subr.bf16.mxu0 0
          %1138 = vmatpush1.bf16.msra.mxu0 %v1048
          %1139 = vmatprep.subr.bf16.mxu0 0
          %1140 = vmatpush1.bf16.msra.mxu0 %v1051
          %1141 = vmatprep.subr.bf16.mxu0 0
          %1142 = vmatpush1.bf16.msra.mxu0 %v1054
          %1143 = vmatprep.subr.bf16.mxu0 0
          %1144 = vmatpush1.bf16.msra.mxu0 %v1057
          %1145 = vmatprep.subr.bf16.mxu0 0
          %1146 = vmatpush1.bf16.msra.mxu0 %v1060
          %1147 = vmatprep.subr.bf16.mxu0 0
          %1148 = vmatpush1.bf16.msra.mxu0 %v1063
          %1149 = vmatprep.subr.bf16.mxu0 0
          %1150 = vmatpush1.bf16.msra.mxu0 %v1066
          %1151 = vmatprep.subr.bf16.mxu0 0
          %1152 = vmatpush1.bf16.msra.mxu0 %v1069
          %1153 = vmatprep.subr.bf16.mxu0 0
          %1154 = vmatpush1.bf16.msra.mxu0 0
          %1155 = vmatprep.subr.bf16.mxu0 0
          %1156 = vmatpush1.bf16.msra.mxu0 0
          %1157 = vmatprep.subr.bf16.mxu0 0
          %1158 = vmatpush1.bf16.msra.mxu0 0
          %1159 = vmatprep.subr.bf16.mxu0 0
          %1160 = vmatpush1.bf16.msra.mxu0 0
          %1161 = vmatprep.subr.bf16.mxu0 0
          %1162 = vmatpush1.bf16.msra.mxu0 0
          %1163 = vmatprep.subr.bf16.mxu0 0
          %1164 = vmatpush1.bf16.msra.mxu0 0
          %1165 = vmatprep.subr.bf16.mxu0 0
          %1166 = vmatpush1.bf16.msra.mxu0 0
          %1167 = vmatprep.subr.bf16.mxu0 0
          %1168 = vmatpush1.bf16.msra.mxu0 0
          %1169 = vmatprep.mubr.bf16.mxu0 0
          %1170 = vmatmul.mubr.bf16.gmra.mrb[0].mxu0 %v964
          %v1171 = vpop.f32.mrb[0].mxu0
          %v1172 = vadd.f32 %v956, %v1171
          %v1173 = vpop.f32.mrb[0].mxu0
          %v1174 = vpop.f32.mrb[0].mxu0
          %v1175 = vadd.f32 %v956, %v1174
          %v1176 = vpop.f32.mrb[0].mxu0
          %1177 = vdwg.mxu0
          %v1178 = vpack.c.bf16 %v1133, %v1129
          %v1179 = vpack.c.bf16 %v1135, %v1131
          %1180 = vmatprep.subr.bf16.mxu0 0
          %1181 = vmatpush1.bf16.xpose.msra.mxu0 %v1179
          %1182 = vmatprep.subr.bf16.mxu0 0
          %1183 = vmatpush1.bf16.xpose.msra.mxu0 0
          %1184 = vmatprep.subr.bf16.mxu0 0
          %1185 = vmatpush1.bf16.xpose.msra.mxu0 0
          %1186 = vmatprep.subr.bf16.mxu0 0
          %1187 = vmatpush1.bf16.xpose.msra.mxu0 0
          %1188 = vmatprep.subr.bf16.mxu0 0
          %1189 = vmatpush1.bf16.xpose.msra.mxu0 0
          %1190 = vmatprep.subr.bf16.mxu0 0
          %1191 = vmatpush1.bf16.xpose.msra.mxu0 0
          %1192 = vmatprep.subr.bf16.mxu0 0
          %1193 = vmatpush1.bf16.xpose.msra.mxu0 0
          %1194 = vmatprep.subr.bf16.mxu0 0
          %1195 = vmatpush1.bf16.xpose.msra.mxu0 0
          %1196 = vmatprep.subr.bf16.mxu0 0
          %1197 = vmatpush1.bf16.xpose.msra.mxu0 0
          %1198 = vmatprep.subr.bf16.mxu0 0
          %1199 = vmatpush1.bf16.xpose.msra.mxu0 0
          %1200 = vmatprep.subr.bf16.mxu0 0
          %1201 = vmatpush1.bf16.xpose.msra.mxu0 0
          %1202 = vmatprep.subr.bf16.mxu0 0
          %1203 = vmatpush1.bf16.xpose.msra.mxu0 0
          %1204 = vmatprep.subr.bf16.mxu0 0
          %1205 = vmatpush1.bf16.xpose.msra.mxu0 0
          %1206 = vmatprep.subr.bf16.mxu0 0
          %1207 = vmatpush1.bf16.xpose.msra.mxu0 0
          %1208 = vmatprep.subr.bf16.mxu0 0
          %1209 = vmatpush1.bf16.xpose.msra.mxu0 0
          %1210 = vmatprep.subr.bf16.mxu0 0
          %1211 = vmatpush1.bf16.xpose.msra.mxu0 0
          %1212 = vmatprep.mubr.bf16.mxu0 0
          %1213 = vmatmul.mubr.bf16.gmra.mrb[0].mxu0 %v1178
          %v1214 = vpop.f32.mrb[0].mxu0
          %v1215 = vadd.f32 0.0, %v1214
          %v1216 = vpop.f32.mrb[0].mxu0
          %v1217 = vpop.f32.mrb[0].mxu0
          %v1218 = vadd.f32 0.0, %v1217
          %v1219 = vpop.f32.mrb[0].mxu0
          %1220 = vdwg.mxu0
          %v1221 = vsel %vm402, %v1215, -1e+30
          %v1222 = vsel %vm402, %v1218, -1e+30
          %vm1223 = vcmask 130048
          %v1224 = vsel %vm1223, %v1221, -inf
          %1225 = vmax.xlane.f32.xlu0 %v1224
          %v1226 = vpop.xlane.xlu0 %1225
          %v1227 = vsel %vm1223, %v1222, -inf
          %1228 = vmax.xlane.f32.xlu0 %v1227
          %v1229 = vpop.xlane.xlu0 %1228
          %v1230 = vsub.f32 %v1221, %v1226
          %v1231 = vsub.f32 %v1222, %v1229
          %v1232 = vmul.f32 %v1230, 1.442695
          %v1233 = vpow.pop %v1232
          %v1234 = vmul.f32 %v1231, 1.442695
          %v1235 = vpow.pop %v1234
          %v1236 = vsel %vm1223, %v1233, 0.0
          %1237 = vadd.xlane.f32.xlu0 %v1236
          %v1238 = vpop.xlane.xlu0 %1237
          %v1239 = vsel %vm1223, %v1235, 0.0
          %1240 = vadd.xlane.f32.xlu0 %v1239
          %v1241 = vpop.xlane.xlu0 %1240
          %v1242 = vrcp.pop %v1238
          %v1243 = vrcp.pop %v1241
          %v1244 = vmul.f32 %v1233, %v1242
          %v1245 = vmul.f32 %v1235, %v1243
          %v1246 = vpack.c.bf16 %v1245, %v1244
          %v1247 = vpack.c.bf16 %v1175, %v1172
          %v1249 = vsel %vm1223, %v1246, 0
          %1251 = vmatprep.subr.bf16.mxu0 0
          %1252 = vmatpush1.bf16.msra.mxu0 %v1247
          %1253 = vmatprep.subr.bf16.mxu0 0
          %1254 = vmatpush1.bf16.msra.mxu0 0
          %1255 = vmatprep.subr.bf16.mxu0 0
          %1256 = vmatpush1.bf16.msra.mxu0 0
          %1257 = vmatprep.subr.bf16.mxu0 0
          %1258 = vmatpush1.bf16.msra.mxu0 0
          %1259 = vmatprep.subr.bf16.mxu0 0
          %1260 = vmatpush1.bf16.msra.mxu0 0
          %1261 = vmatprep.subr.bf16.mxu0 0
          %1262 = vmatpush1.bf16.msra.mxu0 0
          %1263 = vmatprep.subr.bf16.mxu0 0
          %1264 = vmatpush1.bf16.msra.mxu0 0
          %1265 = vmatprep.subr.bf16.mxu0 0
          %1266 = vmatpush1.bf16.msra.mxu0 0
          %1267 = vmatprep.subr.bf16.mxu0 0
          %1268 = vmatpush1.bf16.msra.mxu0 0
          %1269 = vmatprep.subr.bf16.mxu0 0
          %1270 = vmatpush1.bf16.msra.mxu0 0
          %1271 = vmatprep.subr.bf16.mxu0 0
          %1272 = vmatpush1.bf16.msra.mxu0 0
          %1273 = vmatprep.subr.bf16.mxu0 0
          %1274 = vmatpush1.bf16.msra.mxu0 0
          %1275 = vmatprep.subr.bf16.mxu0 0
          %1276 = vmatpush1.bf16.msra.mxu0 0
          %1277 = vmatprep.subr.bf16.mxu0 0
          %1278 = vmatpush1.bf16.msra.mxu0 0
          %1279 = vmatprep.subr.bf16.mxu0 0
          %1280 = vmatpush1.bf16.msra.mxu0 0
          %1281 = vmatprep.subr.bf16.mxu0 0
          %1282 = vmatpush1.bf16.msra.mxu0 0
          %1283 = vmatprep.mubr.bf16.mxu0 0
          %1284 = vmatmul.mubr.bf16.gmra.mrb[0].mxu0 %v1249
          %v1285 = vpop.f32.mrb[0].mxu0
          %v1286 = vadd.f32 0.0, %v1285
          %v1287 = vpop.f32.mrb[0].mxu0
          %v1288 = vpop.f32.mrb[0].mxu0
          %v1289 = vadd.f32 0.0, %v1288
          %v1290 = vpop.f32.mrb[0].mxu0
          %1291 = vdwg.mxu0
          %v1292 = vpack.c.bf16 %v1289, %v1286
          %v1293 = vld [vmem:[#allocation11] sm:$0xf]
          %v1294 = vld [vmem:[#allocation11 + $0x4] sm:$0xf]
          %v1295 = vld [vmem:[#allocation11 + $0x8] sm:$0xf]
          %v1296 = vld [vmem:[#allocation11 + $0xc] sm:$0xf]
          %v1297 = vld [vmem:[#allocation11 + $0x10] sm:$0xf]
          %v1298 = vld [vmem:[#allocation11 + $0x14] sm:$0xf]
          %v1299 = vld [vmem:[#allocation11 + $0x18] sm:$0xf]
          %v1300 = vld [vmem:[#allocation11 + $0x1c] sm:$0xf]
          %v1301 = vld [vmem:[#allocation11 + $0x20] sm:$0xf]
          %v1302 = vld [vmem:[#allocation11 + $0x24] sm:$0xf]
          %v1303 = vld [vmem:[#allocation11 + $0x28] sm:$0xf]
          %v1304 = vld [vmem:[#allocation11 + $0x2c] sm:$0xf]
          %v1305 = vld [vmem:[#allocation11 + $0x30] sm:$0xf]
          %v1306 = vld [vmem:[#allocation11 + $0x34] sm:$0xf]
          %v1307 = vld [vmem:[#allocation11 + $0x38] sm:$0xf]
          %v1308 = vld [vmem:[#allocation11 + $0x3c] sm:$0xf]
          %v1325 = vunpack.c.l.b16 %v1293
          %v1326 = vunpack.c.l.b16 %v1294
          %v1327 = vunpack.c.l.b16 %v1295
          %v1328 = vunpack.c.l.b16 %v1296
          %v1329 = vunpack.c.l.b16 %v1297
          %v1330 = vunpack.c.l.b16 %v1298
          %v1331 = vunpack.c.l.b16 %v1299
          %v1332 = vunpack.c.l.b16 %v1300
          %v1333 = vunpack.c.l.b16 %v1301
          %v1334 = vunpack.c.l.b16 %v1302
          %v1335 = vunpack.c.l.b16 %v1303
          %v1336 = vunpack.c.l.b16 %v1304
          %v1337 = vunpack.c.l.b16 %v1305
          %v1338 = vunpack.c.l.b16 %v1306
          %v1339 = vunpack.c.l.b16 %v1307
          %v1340 = vunpack.c.l.b16 %v1308
          %v1341 = vpack.c.b16 %v1326, %v1325
          %v1342 = vpack.c.b16 %v1328, %v1327
          %v1343 = vpack.c.b16 %v1330, %v1329
          %v1344 = vpack.c.b16 %v1332, %v1331
          %v1345 = vpack.c.b16 %v1334, %v1333
          %v1346 = vpack.c.b16 %v1336, %v1335
          %v1347 = vpack.c.b16 %v1338, %v1337
          %v1348 = vpack.c.b16 %v1340, %v1339
          %1357 = vmatprep.subr.bf16.mxu0 0
          %1358 = vmatpush1.bf16.msra.mxu0 %v1341
          %1359 = vmatprep.subr.bf16.mxu0 0
          %1360 = vmatpush1.bf16.msra.mxu0 %v1342
          %1361 = vmatprep.subr.bf16.mxu0 0
          %1362 = vmatpush1.bf16.msra.mxu0 %v1343
          %1363 = vmatprep.subr.bf16.mxu0 0
          %1364 = vmatpush1.bf16.msra.mxu0 %v1344
          %1365 = vmatprep.subr.bf16.mxu0 0
          %1366 = vmatpush1.bf16.msra.mxu0 %v1345
          %1367 = vmatprep.subr.bf16.mxu0 0
          %1368 = vmatpush1.bf16.msra.mxu0 %v1346
          %1369 = vmatprep.subr.bf16.mxu0 0
          %1370 = vmatpush1.bf16.msra.mxu0 %v1347
          %1371 = vmatprep.subr.bf16.mxu0 0
          %1372 = vmatpush1.bf16.msra.mxu0 %v1348
          %1373 = vmatprep.subr.bf16.mxu0 0
          %1374 = vmatpush1.bf16.msra.mxu0 0
          %1375 = vmatprep.subr.bf16.mxu0 0
          %1376 = vmatpush1.bf16.msra.mxu0 0
          %1377 = vmatprep.subr.bf16.mxu0 0
          %1378 = vmatpush1.bf16.msra.mxu0 0
          %1379 = vmatprep.subr.bf16.mxu0 0
          %1380 = vmatpush1.bf16.msra.mxu0 0
          %1381 = vmatprep.subr.bf16.mxu0 0
          %1382 = vmatpush1.bf16.msra.mxu0 0
          %1383 = vmatprep.subr.bf16.mxu0 0
          %1384 = vmatpush1.bf16.msra.mxu0 0
          %1385 = vmatprep.subr.bf16.mxu0 0
          %1386 = vmatpush1.bf16.msra.mxu0 0
          %1387 = vmatprep.subr.bf16.mxu0 0
          %1388 = vmatpush1.bf16.msra.mxu0 0
          %1389 = vmatprep.mubr.bf16.mxu0 0
          %1390 = vmatmul.mubr.bf16.gmra.mrb[0].mxu0 %v1292
          %v1391 = vpop.f32.mrb[0].mxu0
          %v1392 = vadd.f32 0.0, %v1391
          %v1393 = vpop.f32.mrb[0].mxu0
          %v1394 = vpop.f32.mrb[0].mxu0
          %v1395 = vadd.f32 0.0, %v1394
          %v1396 = vpop.f32.mrb[0].mxu0
          %1397 = vdwg.mxu0
          %1398 = vst [vmem:[%s398] sm:$0xff] %v1392
          %1399 = vst [vmem:[%s398 + $0x8] sm:$0xff] %v1395
        $region88: #{tpu_custom_call.1} parent=55 // pred_fallthru
          _
        %s1400 = sand.u32 %s224, 1
        %s1401 = scalar_lea.sflag [#allocation4], %s1400
        %s1402 = sand.u32 %s224, 1
        %s1403 = smul.addr %s1402, 16
        %s1404 = scalar_lea.vmem [#allocation13], %s1403
        // Predicated region
        $region89: #{tpu_custom_call.1} parent=55 // pred_check
          %p1405 = pneg %p234
        $region90: #{tpu_custom_call.1} parent=55 // pred_check_branch
          %1407 = sbr.rel (%p1405) target = $region92
        $region91: #{tpu_custom_call.1} parent=55 // pred_region
          %s1409 = ssub.s32 256, 256
          %1410 = vsyncadd %s1401, %s1409
          %s1411 = smul.addr %s27, 2
          %s1412 = smul.addr %s1411, 128
          %s1413 = scalar_lea.hbm %s9, %s1412
          %s1414 = sshll.u32 %s1404, 4
          %s1415 = int_to_ptr.vmem [resolvable:$true] %s1414
          %1420 = dma.vmem_to_hbm [thread:$0]  %s1415, 256, %s1413, %s1401, 128, 128, 8
        $region92: #{tpu_custom_call.1} parent=55 // pred_fallthru
          _
      $region56: #{tpu_custom_call.1} parent=5 // pred_fallthru
        _
      %p1421 = scmp.le.s32.totalorder 2, %s22
      // Predicated region
      $region93: #{tpu_custom_call.1} parent=5 // pred_check
        %p1422 = pneg %p1421
      $region94: #{tpu_custom_call.1} parent=5 // pred_check_branch
        %1424 = sbr.rel (%p1422) target = $region96
      $region95: #{tpu_custom_call.1} parent=5 // pred_region
        %s1425 = ssub.s32 %s22, 2
        // Predicated region
        $region97: #{tpu_custom_call.1} parent=95 // pred_check
          %p1426 = pneg %p240
        $region98: #{tpu_custom_call.1} parent=95 // pred_check_branch
          %1428 = sbr.rel (%p1426) target = $region100
        $region99: #{tpu_custom_call.1} parent=95 // pred_region
          %s1429 = sand.u32 %s225, 1
          %s1430 = scalar_lea.sflag [#allocation4], %s1429
          %s1431 = sand.u32 %s225, 1
          %s1432 = smul.addr %s1431, 16
          %s1433 = scalar_lea.vmem [#allocation13], %s1432
          %1434 = dma.done %s1430, 256
        $region100: #{tpu_custom_call.1} parent=95 // pred_fallthru
          _
      $region96: #{tpu_custom_call.1} parent=5 // pred_fallthru
        _
    $region6: #{tpu_custom_call.1} parent=1 // loop_footer
      %s26 = sadd.s32 1, %s22
    $region7: #{tpu_custom_call.1} parent=1 // loop_footer_branch
      %21 = sbr.rel target = $region3
    $region8: #{tpu_custom_call.1} parent=1 // loop_exit
      _
    %1435 = vsyncpa [#allocation3], 1
    %s1436 = scalar_lea.sflag [#allocation3], 1
    %1437 = vsyncpa %s1436, 1
    %1438 = vsyncpa [#allocation6], 1
    %1439 = vsyncpa [#allocation9], 1
    %1440 = vsyncpa [#allocation12], 1
    %1441 = vsyncpa [#allocation4], 1
    %s1442 = scalar_lea.sflag [#allocation4], 1
    %1443 = vsyncpa %s1442, 1

</llo_original>
